<compile_context>
chip_gen: v6e
topology: v6e:2x2x1
jax: 0.10.0
libtpu: 0.0.40
codegen_flags: <defaults>
</compile_context>

<pallas_src>
import functools

import jax
import jax.numpy as jnp
import numpy as np
from jax import lax
from jax.experimental import pallas as pl
from jax.experimental.pallas import tpu as pltpu


def _mixvpr_kernel(mix_depth, x_ref, ln_g_ref, ln_b_ref, w1t_ref, b1_ref,
                   w2t_ref, b2_ref, wc_ref, bc_ref, wr_ref, br_ref,
                   o_ref, xcat_ref):
    """One grid step: (Bt, C, HW) batch tile -> (Bt, R, out_C) descriptor block."""
    Bt, C, HW = x_ref.shape
    R = wr_ref.shape[0]
    wdt = w1t_ref.dtype                       # matmul weight dtype (bf16 or f32)

    # (Bt, C, HW) -> (Bt*C, HW): leading-dim merge only (lane dim untouched,
    # C % 8 == 0), so the whole batch tile feeds the mixer as one tall matrix.
    x = x_ref[...].astype(jnp.float32).reshape(Bt * C, HW)

    # ---- FeatureMixerLayer stack:  x = x + W2 @ relu(W1 @ LN(x)) ------------
    # Static unroll (mix_depth is small).
    # TODO(synk): if mix_depth grows and the bundle dump shows vreg spills,
    # switch to lax.fori_loop(0, mix_depth, ..., unroll=True), indexing the
    # stacked weight refs by the loop variable to bound live ranges.
    for d in range(mix_depth):
        mu = jnp.mean(x, axis=-1, keepdims=True)
        xc = x - mu
        var = jnp.mean(xc * xc, axis=-1, keepdims=True)       # two-pass variance
        xn = xc * lax.rsqrt(var + 1e-5)                       # torch LN eps, EUP rsqrt
        xn = xn * ln_g_ref[d] + ln_b_ref[d]
        h = jnp.dot(xn.astype(wdt), w1t_ref[d],
                    preferred_element_type=jnp.float32) + b1_ref[d]
        h = jnp.maximum(h, 0.0)
        x = x + jnp.dot(h.astype(wdt), w2t_ref[d],
                        preferred_element_type=jnp.float32) + b2_ref[d]

    # ---- tail ----------------------------------------------------------------
    # Relayout (Bt*C, HW) -> (C, Bt*HW) with Bt static slice copies into a VMEM
    # scratch, so the channel projection runs as ONE wide MXU matmul for the
    # whole batch tile (Wc pushed once, N = Bt*HW) instead of Bt separate dots.
    # Scratch stays f32 (plain f32 slice stores); the bf16 cast (if any) happens
    # once on the matmul input below.
    for b in range(Bt):
        xcat_ref[:, b * HW:(b + 1) * HW] = x[b * C:(b + 1) * C, :]

    # channel projection: (out_C, C) @ (C, Bt*HW) -> (out_C, Bt*HW), f32 acc.
    xcp = jnp.dot(wc_ref[...], xcat_ref[...].astype(wdt),
                  preferred_element_type=jnp.float32) + bc_ref[...]

    wr = wr_ref[...]                                          # (R, HW) f32
    br = br_ref[...]                                          # (R, 1)  f32
    for b in range(Bt):                                       # static loop, Bt small
        xcp_b = xcp[:, b * HW:(b + 1) * HW]                   # (out_C, HW)
        # Row projection contracting over HW in native layout (no xcp.T):
        # (R, HW) x (out_C, HW) -> (R, out_C); out_C stays lane-dense.
        xr = lax.dot_general(wr, xcp_b,
                             dimension_numbers=(((1,), (1,)), ((), ())),
                             preferred_element_type=jnp.float32) + br
        # L2 norm over the full (R*out_C) descriptor (order-independent).
        ss = jnp.sum(jnp.sum(xr * xr, axis=1, keepdims=True),
                     axis=0, keepdims=True)                   # (1, 1)
        inv = lax.rsqrt(jnp.maximum(ss, 1e-24))
        o_ref[b] = (xr * inv).astype(o_ref.dtype)             # dense (R, out_C) store


def _largest_divisor_leq(n, cap):
    for t in range(min(n, cap), 0, -1):
        if n % t == 0:
            return t
    return 1


def _default_batch_tile_cap():
    # v7x has 64 MiB VMEM per TensorCore -> keep the activation tile small
    # (Bt <= 4); v5e/v6e have 128 MiB -> Bt <= 8 amortises per-step overhead.
    try:
        vmem = getattr(pltpu.get_tpu_info(), "vmem_capacity_bytes", None)
        if vmem is not None and vmem >= 96 * 1024 * 1024:
            return 8
    except Exception:
        pass
    return 4


def _nbytes(shape, dtype):
    return int(np.prod(shape)) * jnp.dtype(dtype).itemsize


def image_mixvpr_forward(x_nchw, params, *, mix_depth, batch_tile=None,
                         matmul_weight_dtype=jnp.bfloat16,
                         weight_buffer_count=1, dimension_semantics=None):
    """x_nchw: (B, C, H, W) float32.  Returns (B, out_channels * out_rows).

    Notes:
      * matmul_weight_dtype=bf16 (default) also casts the activations fed to
        the W1/W2/Wc dots to bf16 (accumulation stays f32); pass jnp.float32
        to track the f32 torch module tightly.
      * On v7x pass dimension_semantics=(pltpu.CORE_PARALLEL,) so the batch-
        tile grid axis shards across the two TensorCores.
    """
    B, C, H, W = x_nchw.shape
    HW = H * W
    if C % 8 != 0:
        raise ValueError("in_channels must be a multiple of 8 (sublane-aligned) "
                         "so the (Bt, C, HW) -> (Bt*C, HW) merge is a free view")
    x3 = x_nchw.reshape(B, C, HW)

    Bt = batch_tile if batch_tile is not None else \
        _largest_divisor_leq(B, _default_batch_tile_cap())
    if B % Bt != 0:
        raise ValueError(f"batch_tile={Bt} must divide batch={B}")

    wdt = matmul_weight_dtype
    D = mix_depth
    ln_g = params["ln_g"][:, None, :]                         # (D, 1, HW)  f32
    ln_b = params["ln_b"][:, None, :]                         # (D, 1, HW)  f32
    w1t = jnp.transpose(params["w1"], (0, 2, 1)).astype(wdt)  # (D, HW, hid)
    b1 = params["b1"][:, None, :]                             # (D, 1, hid) f32
    w2t = jnp.transpose(params["w2"], (0, 2, 1)).astype(wdt)  # (D, hid, HW)
    b2 = params["b2"][:, None, :]                             # (D, 1, HW)  f32
    wc = params["wc"].astype(wdt)                             # (out_C, C)
    bc = params["bc"][:, None]                                # (out_C, 1)  f32
    wr = params["wr"]                                         # (R, HW)     f32
    br = params["br"][:, None]                                # (R, 1)      f32

    hid = w1t.shape[-1]
    out_C = wc.shape[0]
    R = wr.shape[0]

    # NOTE(review): at production MixVPR shapes hw=400 pads to 512 lanes and
    # out_C is a multiple of 128, so stores/matmuls are unmasked.  If feature
    # maps with HW < 128 are expected in production, pad HW to a lane multiple
    # in this wrapper (zero padded lanes, divide LN statistics by true HW).

    # --- VMEM budget: resident buffers + ~8 MiB headroom (per-generation) -----
    wbufs = 1 if weight_buffer_count == 1 else 2
    weight_bytes = wbufs * (
        _nbytes(ln_g.shape, ln_g.dtype) + _nbytes(ln_b.shape, ln_b.dtype)
        + _nbytes(w1t.shape, wdt) + _nbytes(b1.shape, b1.dtype)
        + _nbytes(w2t.shape, wdt) + _nbytes(b2.shape, b2.dtype)
        + _nbytes(wc.shape, wdt) + _nbytes(bc.shape, bc.dtype)
        + _nbytes(wr.shape, wr.dtype) + _nbytes(br.shape, br.dtype))
    act_bytes = 2 * _nbytes((Bt, C, HW), x3.dtype)            # double-buffered input
    out_bytes = 2 * _nbytes((Bt, R, out_C), jnp.float32)      # double-buffered output
    scratch_bytes = _nbytes((C, Bt * HW), jnp.float32)        # relayout scratch
    inter_bytes = (_nbytes((out_C, Bt * HW), jnp.float32)     # xcp spill
                   + 3 * _nbytes((Bt * C, max(HW, hid)), jnp.float32))
    vmem_limit = (weight_bytes + act_bytes + out_bytes + scratch_bytes
                  + inter_bytes + 8 * 1024 * 1024)
    vmem_limit = int(min(max(vmem_limit, 16 * 1024 * 1024), 120 * 1024 * 1024))

    if dimension_semantics is None:
        dimension_semantics = ("parallel",)

    kernel = functools.partial(_mixvpr_kernel, mix_depth)
    operands = (x3, ln_g, ln_b, w1t, b1, w2t, b2, wc, bc, wr, br)

    def build(buffer_count):
        pmode = None if buffer_count is None else pl.Buffered(buffer_count)

        def const_spec(shape):
            n = len(shape)
            idx = lambda g, _n=n: (0,) * _n
            if pmode is None:
                return pl.BlockSpec(shape, idx)
            return pl.BlockSpec(shape, idx, pipeline_mode=pmode)

        return pl.pallas_call(
            kernel,
            out_shape=jax.ShapeDtypeStruct((B, R, out_C), jnp.float32),
            grid_spec=pltpu.PrefetchScalarGridSpec(
                num_scalar_prefetch=0,
                grid=(B // Bt,),
                in_specs=[
                    pl.BlockSpec((Bt, C, HW), lambda g: (g, 0, 0)),  # activations
                    const_spec((D, 1, HW)),     # LN gamma
                    const_spec((D, 1, HW)),     # LN beta
                    const_spec((D, HW, hid)),   # W1^T
                    const_spec((D, 1, hid)),    # b1
                    const_spec((D, hid, HW)),   # W2^T
                    const_spec((D, 1, HW)),     # b2
                    const_spec((out_C, C)),     # Wc
                    const_spec((out_C, 1)),     # bc
                    const_spec((R, HW)),        # Wr
                    const_spec((R, 1)),         # br
                ],
                out_specs=pl.BlockSpec((Bt, R, out_C), lambda g: (g, 0, 0)),
                scratch_shapes=[pltpu.VMEM((C, Bt * HW), jnp.float32)],
            ),
            compiler_params=pltpu.CompilerParams(
                dimension_semantics=dimension_semantics,
                vmem_limit_bytes=vmem_limit,
            ),
        )

    if weight_buffer_count is not None and weight_buffer_count != 2:
        try:
            out3 = build(weight_buffer_count)(*operands)
        except Exception:
            # pipeline_mode=pl.Buffered(1) rejected on this JAX version:
            # fall back to default double-buffering of the constant weights.
            out3 = build(None)(*operands)
    else:
        out3 = build(None)(*operands)

    # (B, R, out_C) -> (B, out_C, R) -> (B, out_C*R): pure layout plumbing in
    # the wrapper (review item 1), so the kernel store stays lane-dense.
    return jnp.transpose(out3, (0, 2, 1)).reshape(B, out_C * R)


def make_params(key, *, in_channels, hw, out_channels, out_rows, mix_depth,
                mlp_ratio):
    """Deterministic synthetic init mirroring ImageMixVPR.__init__ shapes
    (torch nn.Linear layout: weight = (out_features, in_features))."""
    hid = int(hw * mlp_ratio)
    ks = jax.random.split(key, 2 * mix_depth + 4)

    def trunc(k, shape, std=0.02):
        return (std * jax.random.truncated_normal(k, -2.0, 2.0, shape)
                ).astype(jnp.float32)

    ln_g, ln_b, w1, b1, w2, b2 = [], [], [], [], [], []
    for d in range(mix_depth):
        ln_g.append(jnp.ones((hw,), jnp.float32))
        ln_b.append(jnp.zeros((hw,), jnp.float32))
        w1.append(trunc(ks[2 * d + 0], (hid, hw)))
        b1.append(jnp.zeros((hid,), jnp.float32))
        w2.append(trunc(ks[2 * d + 1], (hw, hid)))
        b2.append(jnp.zeros((hw,), jnp.float32))

    wc = trunc(ks[-4], (out_channels, in_channels), std=0.05)
    bc = trunc(ks[-3], (out_channels,), std=0.05)
    wr = trunc(ks[-2], (out_rows, hw), std=0.05)
    br = trunc(ks[-1], (out_rows,), std=0.05)

    return {
        "ln_g": jnp.stack(ln_g), "ln_b": jnp.stack(ln_b),
        "w1": jnp.stack(w1), "b1": jnp.stack(b1),
        "w2": jnp.stack(w2), "b2": jnp.stack(b2),
        "wc": wc, "bc": bc, "wr": wr, "br": br,
    }


def reference_forward(x_nchw, params, *, mix_depth):
    """Pure-JAX reference mirroring the PyTorch module, for validation."""
    B, C, H, W = x_nchw.shape
    x = x_nchw.reshape(B, C, H * W)
    for d in range(mix_depth):
        mu = jnp.mean(x, axis=-1, keepdims=True)
        var = jnp.mean((x - mu) ** 2, axis=-1, keepdims=True)
        xn = (x - mu) / jnp.sqrt(var + 1e-5)
        xn = xn * params["ln_g"][d] + params["ln_b"][d]
        h = jnp.maximum(xn @ params["w1"][d].T + params["b1"][d], 0.0)
        x = x + (h @ params["w2"][d].T + params["b2"][d])
    x = jnp.einsum("oc,bch->boh", params["wc"], x) + params["bc"][None, :, None]
    x = jnp.einsum("boh,rh->bor", x, params["wr"]) + params["br"]
    x = x.reshape(B, -1)
    n = jnp.sqrt(jnp.sum(x * x, axis=-1, keepdims=True))
    return x / jnp.maximum(n, 1e-12)


if __name__ == "__main__":
    # Small shapes consistent with ImageMixVPR's forward:
    #   in_channels=32, in_h=in_w=8 (hw=64), out_channels=16, out_rows=4.
    B, C, H, W = 2, 32, 8, 8
    OUT_C, OUT_R = 16, 4
    MIX_DEPTH, MLP_RATIO = 1, 1

    key = jax.random.PRNGKey(0)
    kx, kp = jax.random.split(key)
    x = jax.random.normal(kx, (B, C, H, W), dtype=jnp.float32)
    params = make_params(kp, in_channels=C, hw=H * W, out_channels=OUT_C,
                         out_rows=OUT_R, mix_depth=MIX_DEPTH,
                         mlp_ratio=MLP_RATIO)

    ref = jax.block_until_ready(
        reference_forward(x, params, mix_depth=MIX_DEPTH))

    # f32 matmul weights: strict comparison against the pure-JAX reference.
    out_f32 = jax.block_until_ready(
        image_mixvpr_forward(x, params, mix_depth=MIX_DEPTH,
                             matmul_weight_dtype=jnp.float32))
    assert out_f32.shape == (B, OUT_C * OUT_R)
    np.testing.assert_allclose(np.asarray(out_f32), np.asarray(ref),
                               rtol=1e-4, atol=1e-5)

    # Default path: bf16 matmul weights (MXU-native), f32 accumulation.
    out_bf16 = jax.block_until_ready(
        image_mixvpr_forward(x, params, mix_depth=MIX_DEPTH))
    np.testing.assert_allclose(np.asarray(out_bf16), np.asarray(ref),
                               rtol=5e-2, atol=1e-2)

    print("KERNEL_OK")
</pallas_src>

<mosaic_0001>
module attributes {stable_mosaic.version = 11 : i64} {
  func.func @_mixvpr_kernel(%arg0: i32, %arg1: memref<2x32x64xf32, #tpu.memory_space<vmem>>, %arg2: memref<1x1x64xf32, #tpu.memory_space<vmem>>, %arg3: memref<1x1x64xf32, #tpu.memory_space<vmem>>, %arg4: memref<1x64x64xf32, #tpu.memory_space<vmem>>, %arg5: memref<1x1x64xf32, #tpu.memory_space<vmem>>, %arg6: memref<1x64x64xf32, #tpu.memory_space<vmem>>, %arg7: memref<1x1x64xf32, #tpu.memory_space<vmem>>, %arg8: memref<16x32xf32, #tpu.memory_space<vmem>>, %arg9: memref<16x1xf32, #tpu.memory_space<vmem>>, %arg10: memref<4x64xf32, #tpu.memory_space<vmem>>, %arg11: memref<4x1xf32, #tpu.memory_space<vmem>>, %arg12: memref<2x4x16xf32, #tpu.memory_space<vmem>>, %arg13: memref<32x128xf32, #tpu.memory_space<vmem>>) attributes {dimension_semantics = [#tpu.dimension_semantics<parallel>], iteration_bounds = array<i64: 1>, scalar_prefetch = 0 : i64, scratch_operands = 1 : i64, tpu.core_type = #tpu.core_type<tc>, window_params = [{transform_indices = @transform_0, window_bounds = array<i64: 2, 32, 64>}, {pipeline_mode = #tpu.pipeline_mode<synchronous>, transform_indices = @transform_1, window_bounds = array<i64: 1, 1, 64>}, {pipeline_mode = #tpu.pipeline_mode<synchronous>, transform_indices = @transform_2, window_bounds = array<i64: 1, 1, 64>}, {pipeline_mode = #tpu.pipeline_mode<synchronous>, transform_indices = @transform_3, window_bounds = array<i64: 1, 64, 64>}, {pipeline_mode = #tpu.pipeline_mode<synchronous>, transform_indices = @transform_4, window_bounds = array<i64: 1, 1, 64>}, {pipeline_mode = #tpu.pipeline_mode<synchronous>, transform_indices = @transform_5, window_bounds = array<i64: 1, 64, 64>}, {pipeline_mode = #tpu.pipeline_mode<synchronous>, transform_indices = @transform_6, window_bounds = array<i64: 1, 1, 64>}, {pipeline_mode = #tpu.pipeline_mode<synchronous>, transform_indices = @transform_7, window_bounds = array<i64: 16, 32>}, {pipeline_mode = #tpu.pipeline_mode<synchronous>, transform_indices = @transform_8, window_bounds = array<i64: 16, 1>}, {pipeline_mode = #tpu.pipeline_mode<synchronous>, transform_indices = @transform_9, window_bounds = array<i64: 4, 64>}, {pipeline_mode = #tpu.pipeline_mode<synchronous>, transform_indices = @transform_10, window_bounds = array<i64: 4, 1>}, {transform_indices = @transform_11, window_bounds = array<i64: 2, 4, 16>}]} {
    %c0 = arith.constant 0 : index
    %c0_0 = arith.constant 0 : index
    %c0_1 = arith.constant 0 : index
    %0 = vector.load %arg1[%c0, %c0_0, %c0_1] : memref<2x32x64xf32, #tpu.memory_space<vmem>>, vector<2x32x64xf32>
    %1 = vector.shape_cast %0 : vector<2x32x64xf32> to vector<64x64xf32>
    %cst = arith.constant dense<0.000000e+00> : vector<64xf32>
    %2 = vector.multi_reduction <add>, %1, %cst [1] : vector<64x64xf32> to vector<64xf32>
    %3 = vector.shape_cast %2 : vector<64xf32> to vector<64x1xf32>
    %cst_2 = arith.constant 6.400000e+01 : f32
    %4 = vector.broadcast %cst_2 : f32 to vector<64x1xf32>
    %5 = arith.divf %3, %4 : vector<64x1xf32>
    %6 = vector.broadcast %5 : vector<64x1xf32> to vector<64x64xf32>
    %7 = arith.subf %1, %6 : vector<64x64xf32>
    %8 = arith.mulf %7, %7 : vector<64x64xf32>
    %cst_3 = arith.constant dense<0.000000e+00> : vector<64xf32>
    %9 = vector.multi_reduction <add>, %8, %cst_3 [1] : vector<64x64xf32> to vector<64xf32>
    %10 = vector.shape_cast %9 : vector<64xf32> to vector<64x1xf32>
    %cst_4 = arith.constant 6.400000e+01 : f32
    %11 = vector.broadcast %cst_4 : f32 to vector<64x1xf32>
    %12 = arith.divf %10, %11 : vector<64x1xf32>
    %cst_5 = arith.constant 9.99999974E-6 : f32
    %13 = vector.broadcast %cst_5 : f32 to vector<64x1xf32>
    %14 = arith.addf %12, %13 : vector<64x1xf32>
    %15 = math.rsqrt %14 : vector<64x1xf32>
    %16 = vector.broadcast %15 : vector<64x1xf32> to vector<64x64xf32>
    %17 = arith.mulf %7, %16 : vector<64x64xf32>
    %c0_6 = arith.constant 0 : index
    %c0_7 = arith.constant 0 : index
    %c0_8 = arith.constant 0 : index
    %18 = vector.load %arg2[%c0_6, %c0_7, %c0_8] : memref<1x1x64xf32, #tpu.memory_space<vmem>>, vector<1x1x64xf32>
    %19 = vector.shape_cast %18 : vector<1x1x64xf32> to vector<1x64xf32>
    %20 = vector.broadcast %19 : vector<1x64xf32> to vector<64x64xf32>
    %21 = arith.mulf %17, %20 : vector<64x64xf32>
    %c0_9 = arith.constant 0 : index
    %c0_10 = arith.constant 0 : index
    %c0_11 = arith.constant 0 : index
    %22 = vector.load %arg3[%c0_9, %c0_10, %c0_11] : memref<1x1x64xf32, #tpu.memory_space<vmem>>, vector<1x1x64xf32>
    %23 = vector.shape_cast %22 : vector<1x1x64xf32> to vector<1x64xf32>
    %24 = vector.broadcast %23 : vector<1x64xf32> to vector<64x64xf32>
    %25 = arith.addf %21, %24 : vector<64x64xf32>
    %c0_12 = arith.constant 0 : index
    %c0_13 = arith.constant 0 : index
    %c0_14 = arith.constant 0 : index
    %26 = vector.load %arg4[%c0_12, %c0_13, %c0_14] : memref<1x64x64xf32, #tpu.memory_space<vmem>>, vector<1x64x64xf32>
    %27 = vector.shape_cast %26 : vector<1x64x64xf32> to vector<64x64xf32>
    %cst_15 = arith.constant dense<0.000000e+00> : vector<64x64xf32>
    %28 = tpu.matmul %25, %27, %cst_15 {dimension_numbers = #tpu.dot_dimension_numbers<[1], [0], [0], [1], [0, 0, 1, 1], [], []>} : vector<64x64xf32>, vector<64x64xf32>, vector<64x64xf32> -> vector<64x64xf32>
    %c0_16 = arith.constant 0 : index
    %c0_17 = arith.constant 0 : index
    %c0_18 = arith.constant 0 : index
    %29 = vector.load %arg5[%c0_16, %c0_17, %c0_18] : memref<1x1x64xf32, #tpu.memory_space<vmem>>, vector<1x1x64xf32>
    %30 = vector.shape_cast %29 : vector<1x1x64xf32> to vector<1x64xf32>
    %31 = vector.broadcast %30 : vector<1x64xf32> to vector<64x64xf32>
    %32 = arith.addf %28, %31 : vector<64x64xf32>
    %cst_19 = arith.constant 0.000000e+00 : f32
    %33 = vector.broadcast %cst_19 : f32 to vector<64x64xf32>
    %34 = arith.maximumf %32, %33 : vector<64x64xf32>
    %c0_20 = arith.constant 0 : index
    %c0_21 = arith.constant 0 : index
    %c0_22 = arith.constant 0 : index
    %35 = vector.load %arg6[%c0_20, %c0_21, %c0_22] : memref<1x64x64xf32, #tpu.memory_space<vmem>>, vector<1x64x64xf32>
    %36 = vector.shape_cast %35 : vector<1x64x64xf32> to vector<64x64xf32>
    %cst_23 = arith.constant dense<0.000000e+00> : vector<64x64xf32>
    %37 = tpu.matmul %34, %36, %cst_23 {dimension_numbers = #tpu.dot_dimension_numbers<[1], [0], [0], [1], [0, 0, 1, 1], [], []>} : vector<64x64xf32>, vector<64x64xf32>, vector<64x64xf32> -> vector<64x64xf32>
    %38 = arith.addf %1, %37 : vector<64x64xf32>
    %c0_24 = arith.constant 0 : index
    %c0_25 = arith.constant 0 : index
    %c0_26 = arith.constant 0 : index
    %39 = vector.load %arg7[%c0_24, %c0_25, %c0_26] : memref<1x1x64xf32, #tpu.memory_space<vmem>>, vector<1x1x64xf32>
    %40 = vector.shape_cast %39 : vector<1x1x64xf32> to vector<1x64xf32>
    %41 = vector.broadcast %40 : vector<1x64xf32> to vector<64x64xf32>
    %42 = arith.addf %38, %41 : vector<64x64xf32>
    %43 = vector.extract_strided_slice %42 {offsets = [0, 0], sizes = [32, 64], strides = [1, 1]} : vector<64x64xf32> to vector<32x64xf32>
    %c0_27 = arith.constant 0 : index
    %c0_28 = arith.constant 0 : index
    %44 = vector.load %arg13[%c0_27, %c0_28] : memref<32x128xf32, #tpu.memory_space<vmem>>, vector<32x64xf32>
    tpu.vector_store %arg13[%c0_27, %c0_28], %43 {strides = array<i32>} : memref<32x128xf32, #tpu.memory_space<vmem>>, vector<32x64xf32>,
    %45 = vector.extract_strided_slice %42 {offsets = [32, 0], sizes = [32, 64], strides = [1, 1]} : vector<64x64xf32> to vector<32x64xf32>
    %c0_29 = arith.constant 0 : index
    %c64 = arith.constant 64 : index
    %46 = vector.load %arg13[%c0_29, %c64] : memref<32x128xf32, #tpu.memory_space<vmem>>, vector<32x64xf32>
    tpu.vector_store %arg13[%c0_29, %c64], %45 {strides = array<i32>} : memref<32x128xf32, #tpu.memory_space<vmem>>, vector<32x64xf32>,
    %c0_30 = arith.constant 0 : index
    %c0_31 = arith.constant 0 : index
    %47 = vector.load %arg8[%c0_30, %c0_31] : memref<16x32xf32, #tpu.memory_space<vmem>>, vector<16x32xf32>
    %c0_32 = arith.constant 0 : index
    %c0_33 = arith.constant 0 : index
    %48 = vector.load %arg13[%c0_32, %c0_33] : memref<32x128xf32, #tpu.memory_space<vmem>>, vector<32x128xf32>
    %cst_34 = arith.constant dense<0.000000e+00> : vector<16x128xf32>
    %49 = tpu.matmul %47, %48, %cst_34 {dimension_numbers = #tpu.dot_dimension_numbers<[1], [0], [0], [1], [0, 0, 1, 1], [], []>} : vector<16x32xf32>, vector<32x128xf32>, vector<16x128xf32> -> vector<16x128xf32>
    %c0_35 = arith.constant 0 : index
    %c0_36 = arith.constant 0 : index
    %50 = vector.load %arg9[%c0_35, %c0_36] : memref<16x1xf32, #tpu.memory_space<vmem>>, vector<16x1xf32>
    %51 = vector.broadcast %50 : vector<16x1xf32> to vector<16x128xf32>
    %52 = arith.addf %49, %51 : vector<16x128xf32>
    %c0_37 = arith.constant 0 : index
    %c0_38 = arith.constant 0 : index
    %53 = vector.load %arg10[%c0_37, %c0_38] : memref<4x64xf32, #tpu.memory_space<vmem>>, vector<4x64xf32>
    %c0_39 = arith.constant 0 : index
    %c0_40 = arith.constant 0 : index
    %54 = vector.load %arg11[%c0_39, %c0_40] : memref<4x1xf32, #tpu.memory_space<vmem>>, vector<4x1xf32>
    %55 = vector.extract_strided_slice %52 {offsets = [0, 0], sizes = [16, 64], strides = [1, 1]} : vector<16x128xf32> to vector<16x64xf32>
    %cst_41 = arith.constant dense<0.000000e+00> : vector<4x16xf32>
    %56 = tpu.matmul %53, %55, %cst_41 {dimension_numbers = #tpu.dot_dimension_numbers<[1], [1], [0], [0], [0, 0, 1, 0], [], []>} : vector<4x64xf32>, vector<16x64xf32>, vector<4x16xf32> -> vector<4x16xf32>
    %57 = vector.broadcast %54 : vector<4x1xf32> to vector<4x16xf32>
    %58 = arith.addf %56, %57 : vector<4x16xf32>
    %59 = arith.mulf %58, %58 : vector<4x16xf32>
    %cst_42 = arith.constant dense<0.000000e+00> : vector<4xf32>
    %60 = vector.multi_reduction <add>, %59, %cst_42 [1] : vector<4x16xf32> to vector<4xf32>
    %61 = vector.shape_cast %60 : vector<4xf32> to vector<4x1xf32>
    %cst_43 = arith.constant dense<0.000000e+00> : vector<1xf32>
    %62 = vector.multi_reduction <add>, %61, %cst_43 [0] : vector<4x1xf32> to vector<1xf32>
    %63 = vector.shape_cast %62 : vector<1xf32> to vector<1x1xf32>
    %cst_44 = arith.constant 1.000000e-24 : f32
    %64 = vector.broadcast %cst_44 : f32 to vector<1x1xf32>
    %65 = arith.maximumf %63, %64 : vector<1x1xf32>
    %66 = math.rsqrt %65 : vector<1x1xf32>
    %67 = vector.broadcast %66 : vector<1x1xf32> to vector<4x16xf32>
    %68 = arith.mulf %58, %67 : vector<4x16xf32>
    %c0_45 = arith.constant 0 : index
    %c0_46 = arith.constant 0 : index
    %c0_47 = arith.constant 0 : index
    %69 = vector.load %arg12[%c0_45, %c0_46, %c0_47] : memref<2x4x16xf32, #tpu.memory_space<vmem>>, vector<1x4x16xf32>
    %70 = vector.shape_cast %69 : vector<1x4x16xf32> to vector<4x16xf32>
    %71 = vector.shape_cast %68 : vector<4x16xf32> to vector<1x4x16xf32>
    tpu.vector_store %arg12[%c0_45, %c0_46, %c0_47], %71 {strides = array<i32>} : memref<2x4x16xf32, #tpu.memory_space<vmem>>, vector<1x4x16xf32>,
    %72 = vector.extract_strided_slice %52 {offsets = [0, 64], sizes = [16, 64], strides = [1, 1]} : vector<16x128xf32> to vector<16x64xf32>
    %cst_48 = arith.constant dense<0.000000e+00> : vector<4x16xf32>
    %73 = tpu.matmul %53, %72, %cst_48 {dimension_numbers = #tpu.dot_dimension_numbers<[1], [1], [0], [0], [0, 0, 1, 0], [], []>} : vector<4x64xf32>, vector<16x64xf32>, vector<4x16xf32> -> vector<4x16xf32>
    %74 = vector.broadcast %54 : vector<4x1xf32> to vector<4x16xf32>
    %75 = arith.addf %73, %74 : vector<4x16xf32>
    %76 = arith.mulf %75, %75 : vector<4x16xf32>
    %cst_49 = arith.constant dense<0.000000e+00> : vector<4xf32>
    %77 = vector.multi_reduction <add>, %76, %cst_49 [1] : vector<4x16xf32> to vector<4xf32>
    %78 = vector.shape_cast %77 : vector<4xf32> to vector<4x1xf32>
    %cst_50 = arith.constant dense<0.000000e+00> : vector<1xf32>
    %79 = vector.multi_reduction <add>, %78, %cst_50 [0] : vector<4x1xf32> to vector<1xf32>
    %80 = vector.shape_cast %79 : vector<1xf32> to vector<1x1xf32>
    %cst_51 = arith.constant 1.000000e-24 : f32
    %81 = vector.broadcast %cst_51 : f32 to vector<1x1xf32>
    %82 = arith.maximumf %80, %81 : vector<1x1xf32>
    %83 = math.rsqrt %82 : vector<1x1xf32>
    %84 = vector.broadcast %83 : vector<1x1xf32> to vector<4x16xf32>
    %85 = arith.mulf %75, %84 : vector<4x16xf32>
    %c1 = arith.constant 1 : index
    %c0_52 = arith.constant 0 : index
    %c0_53 = arith.constant 0 : index
    %86 = vector.load %arg12[%c1, %c0_52, %c0_53] : memref<2x4x16xf32, #tpu.memory_space<vmem>>, vector<1x4x16xf32>
    %87 = vector.shape_cast %86 : vector<1x4x16xf32> to vector<4x16xf32>
    %88 = vector.shape_cast %85 : vector<4x16xf32> to vector<1x4x16xf32>
    tpu.vector_store %arg12[%c1, %c0_52, %c0_53], %88 {strides = array<i32>} : memref<2x4x16xf32, #tpu.memory_space<vmem>>, vector<1x4x16xf32>,
    return
  }
  func.func @transform_0(%arg0: i32) -> (i32, i32, i32) {
    %c0_i32 = arith.constant 0 : i32
    %c0_i32_0 = arith.constant 0 : i32
    %c0_i32_1 = arith.constant 0 : i32
    return %arg0, %c0_i32, %c0_i32_0 : i32, i32, i32
  }
  func.func @transform_1(%arg0: i32) -> (i32, i32, i32) {
    %c0_i32 = arith.constant 0 : i32
    %c0_i32_0 = arith.constant 0 : i32
    %c0_i32_1 = arith.constant 0 : i32
    %c0_i32_2 = arith.constant 0 : i32
    return %c0_i32, %c0_i32_0, %c0_i32_1 : i32, i32, i32
  }
  func.func @transform_2(%arg0: i32) -> (i32, i32, i32) {
    %c0_i32 = arith.constant 0 : i32
    %c0_i32_0 = arith.constant 0 : i32
    %c0_i32_1 = arith.constant 0 : i32
    %c0_i32_2 = arith.constant 0 : i32
    return %c0_i32, %c0_i32_0, %c0_i32_1 : i32, i32, i32
  }
  func.func @transform_3(%arg0: i32) -> (i32, i32, i32) {
    %c0_i32 = arith.constant 0 : i32
    %c0_i32_0 = arith.constant 0 : i32
    %c0_i32_1 = arith.constant 0 : i32
    %c0_i32_2 = arith.constant 0 : i32
    return %c0_i32, %c0_i32_0, %c0_i32_1 : i32, i32, i32
  }
  func.func @transform_4(%arg0: i32) -> (i32, i32, i32) {
    %c0_i32 = arith.constant 0 : i32
    %c0_i32_0 = arith.constant 0 : i32
    %c0_i32_1 = arith.constant 0 : i32
    %c0_i32_2 = arith.constant 0 : i32
    return %c0_i32, %c0_i32_0, %c0_i32_1 : i32, i32, i32
  }
  func.func @transform_5(%arg0: i32) -> (i32, i32, i32) {
    %c0_i32 = arith.constant 0 : i32
    %c0_i32_0 = arith.constant 0 : i32
    %c0_i32_1 = arith.constant 0 : i32
    %c0_i32_2 = arith.constant 0 : i32
    return %c0_i32, %c0_i32_0, %c0_i32_1 : i32, i32, i32
  }
  func.func @transform_6(%arg0: i32) -> (i32, i32, i32) {
    %c0_i32 = arith.constant 0 : i32
    %c0_i32_0 = arith.constant 0 : i32
    %c0_i32_1 = arith.constant 0 : i32
    %c0_i32_2 = arith.constant 0 : i32
    return %c0_i32, %c0_i32_0, %c0_i32_1 : i32, i32, i32
  }
  func.func @transform_7(%arg0: i32) -> (i32, i32) {
    %c0_i32 = arith.constant 0 : i32
    %c0_i32_0 = arith.constant 0 : i32
    %c0_i32_1 = arith.constant 0 : i32
    return %c0_i32, %c0_i32_0 : i32, i32
  }
  func.func @transform_8(%arg0: i32) -> (i32, i32) {
    %c0_i32 = arith.constant 0 : i32
    %c0_i32_0 = arith.constant 0 : i32
    %c0_i32_1 = arith.constant 0 : i32
    return %c0_i32, %c0_i32_0 : i32, i32
  }
  func.func @transform_9(%arg0: i32) -> (i32, i32) {
    %c0_i32 = arith.constant 0 : i32
    %c0_i32_0 = arith.constant 0 : i32
    %c0_i32_1 = arith.constant 0 : i32
    return %c0_i32, %c0_i32_0 : i32, i32
  }
  func.func @transform_10(%arg0: i32) -> (i32, i32) {
    %c0_i32 = arith.constant 0 : i32
    %c0_i32_0 = arith.constant 0 : i32
    %c0_i32_1 = arith.constant 0 : i32
    return %c0_i32, %c0_i32_0 : i32, i32
  }
  func.func @transform_11(%arg0: i32) -> (i32, i32, i32) {
    %c0_i32 = arith.constant 0 : i32
    %c0_i32_0 = arith.constant 0 : i32
    %c0_i32_1 = arith.constant 0 : i32
    return %arg0, %c0_i32, %c0_i32_0 : i32, i32, i32
  }
}

module attributes {stable_mosaic.version = 11 : i64} {
  func.func @_mixvpr_kernel(%arg0: i32, %arg1: memref<2x32x64xf32, #tpu.memory_space<vmem>>, %arg2: memref<1x1x64xf32, #tpu.memory_space<vmem>>, %arg3: memref<1x1x64xf32, #tpu.memory_space<vmem>>, %arg4: memref<1x64x64xf32, #tpu.memory_space<vmem>>, %arg5: memref<1x1x64xf32, #tpu.memory_space<vmem>>, %arg6: memref<1x64x64xf32, #tpu.memory_space<vmem>>, %arg7: memref<1x1x64xf32, #tpu.memory_space<vmem>>, %arg8: memref<16x32xf32, #tpu.memory_space<vmem>>, %arg9: memref<16x1xf32, #tpu.memory_space<vmem>>, %arg10: memref<4x64xf32, #tpu.memory_space<vmem>>, %arg11: memref<4x1xf32, #tpu.memory_space<vmem>>, %arg12: memref<2x4x16xf32, #tpu.memory_space<vmem>>, %arg13: memref<32x128xf32, #tpu.memory_space<vmem>>) attributes {dimension_semantics = [#tpu.dimension_semantics<parallel>], iteration_bounds = array<i64: 1>, scalar_prefetch = 0 : i64, scratch_operands = 1 : i64, tpu.core_type = #tpu.core_type<tc>, window_params = [{transform_indices = @transform_0, window_bounds = array<i64: 2, 32, 64>}, {pipeline_mode = #tpu.pipeline_mode<synchronous>, transform_indices = @transform_1, window_bounds = array<i64: 1, 1, 64>}, {pipeline_mode = #tpu.pipeline_mode<synchronous>, transform_indices = @transform_2, window_bounds = array<i64: 1, 1, 64>}, {pipeline_mode = #tpu.pipeline_mode<synchronous>, transform_indices = @transform_3, window_bounds = array<i64: 1, 64, 64>}, {pipeline_mode = #tpu.pipeline_mode<synchronous>, transform_indices = @transform_4, window_bounds = array<i64: 1, 1, 64>}, {pipeline_mode = #tpu.pipeline_mode<synchronous>, transform_indices = @transform_5, window_bounds = array<i64: 1, 64, 64>}, {pipeline_mode = #tpu.pipeline_mode<synchronous>, transform_indices = @transform_6, window_bounds = array<i64: 1, 1, 64>}, {pipeline_mode = #tpu.pipeline_mode<synchronous>, transform_indices = @transform_7, window_bounds = array<i64: 16, 32>}, {pipeline_mode = #tpu.pipeline_mode<synchronous>, transform_indices = @transform_8, window_bounds = array<i64: 16, 1>}, {pipeline_mode = #tpu.pipeline_mode<synchronous>, transform_indices = @transform_9, window_bounds = array<i64: 4, 64>}, {pipeline_mode = #tpu.pipeline_mode<synchronous>, transform_indices = @transform_10, window_bounds = array<i64: 4, 1>}, {transform_indices = @transform_11, window_bounds = array<i64: 2, 4, 16>}]} {
    %c0 = arith.constant 0 : index
    %c0_0 = arith.constant 0 : index
    %c0_1 = arith.constant 0 : index
    %0 = vector.load %arg1[%c0, %c0_0, %c0_1] : memref<2x32x64xf32, #tpu.memory_space<vmem>>, vector<2x32x64xf32>
    %1 = vector.shape_cast %0 : vector<2x32x64xf32> to vector<64x64xf32>
    %cst = arith.constant dense<0.000000e+00> : vector<64xf32>
    %2 = vector.multi_reduction <add>, %1, %cst [1] : vector<64x64xf32> to vector<64xf32>
    %3 = vector.shape_cast %2 : vector<64xf32> to vector<64x1xf32>
    %cst_2 = arith.constant 6.400000e+01 : f32
    %4 = vector.broadcast %cst_2 : f32 to vector<64x1xf32>
    %5 = arith.divf %3, %4 : vector<64x1xf32>
    %6 = vector.broadcast %5 : vector<64x1xf32> to vector<64x64xf32>
    %7 = arith.subf %1, %6 : vector<64x64xf32>
    %8 = arith.mulf %7, %7 : vector<64x64xf32>
    %cst_3 = arith.constant dense<0.000000e+00> : vector<64xf32>
    %9 = vector.multi_reduction <add>, %8, %cst_3 [1] : vector<64x64xf32> to vector<64xf32>
    %10 = vector.shape_cast %9 : vector<64xf32> to vector<64x1xf32>
    %cst_4 = arith.constant 6.400000e+01 : f32
    %11 = vector.broadcast %cst_4 : f32 to vector<64x1xf32>
    %12 = arith.divf %10, %11 : vector<64x1xf32>
    %cst_5 = arith.constant 9.99999974E-6 : f32
    %13 = vector.broadcast %cst_5 : f32 to vector<64x1xf32>
    %14 = arith.addf %12, %13 : vector<64x1xf32>
    %15 = math.rsqrt %14 : vector<64x1xf32>
    %16 = vector.broadcast %15 : vector<64x1xf32> to vector<64x64xf32>
    %17 = arith.mulf %7, %16 : vector<64x64xf32>
    %c0_6 = arith.constant 0 : index
    %c0_7 = arith.constant 0 : index
    %c0_8 = arith.constant 0 : index
    %18 = vector.load %arg2[%c0_6, %c0_7, %c0_8] : memref<1x1x64xf32, #tpu.memory_space<vmem>>, vector<1x1x64xf32>
    %19 = vector.shape_cast %18 : vector<1x1x64xf32> to vector<1x64xf32>
    %20 = vector.broadcast %19 : vector<1x64xf32> to vector<64x64xf32>
    %21 = arith.mulf %17, %20 : vector<64x64xf32>
    %c0_9 = arith.constant 0 : index
    %c0_10 = arith.constant 0 : index
    %c0_11 = arith.constant 0 : index
    %22 = vector.load %arg3[%c0_9, %c0_10, %c0_11] : memref<1x1x64xf32, #tpu.memory_space<vmem>>, vector<1x1x64xf32>
    %23 = vector.shape_cast %22 : vector<1x1x64xf32> to vector<1x64xf32>
    %24 = vector.broadcast %23 : vector<1x64xf32> to vector<64x64xf32>
    %25 = arith.addf %21, %24 : vector<64x64xf32>
    %c0_12 = arith.constant 0 : index
    %c0_13 = arith.constant 0 : index
    %c0_14 = arith.constant 0 : index
    %26 = vector.load %arg4[%c0_12, %c0_13, %c0_14] : memref<1x64x64xf32, #tpu.memory_space<vmem>>, vector<1x64x64xf32>
    %27 = vector.shape_cast %26 : vector<1x64x64xf32> to vector<64x64xf32>
    %cst_15 = arith.constant dense<0.000000e+00> : vector<64x64xf32>
    %28 = tpu.matmul %25, %27, %cst_15 {dimension_numbers = #tpu.dot_dimension_numbers<[1], [0], [0], [1], [0, 0, 1, 1], [], []>} : vector<64x64xf32>, vector<64x64xf32>, vector<64x64xf32> -> vector<64x64xf32>
    %c0_16 = arith.constant 0 : index
    %c0_17 = arith.constant 0 : index
    %c0_18 = arith.constant 0 : index
    %29 = vector.load %arg5[%c0_16, %c0_17, %c0_18] : memref<1x1x64xf32, #tpu.memory_space<vmem>>, vector<1x1x64xf32>
    %30 = vector.shape_cast %29 : vector<1x1x64xf32> to vector<1x64xf32>
    %31 = vector.broadcast %30 : vector<1x64xf32> to vector<64x64xf32>
    %32 = arith.addf %28, %31 : vector<64x64xf32>
    %cst_19 = arith.constant 0.000000e+00 : f32
    %33 = vector.broadcast %cst_19 : f32 to vector<64x64xf32>
    %34 = arith.maximumf %32, %33 : vector<64x64xf32>
    %c0_20 = arith.constant 0 : index
    %c0_21 = arith.constant 0 : index
    %c0_22 = arith.constant 0 : index
    %35 = vector.load %arg6[%c0_20, %c0_21, %c0_22] : memref<1x64x64xf32, #tpu.memory_space<vmem>>, vector<1x64x64xf32>
    %36 = vector.shape_cast %35 : vector<1x64x64xf32> to vector<64x64xf32>
    %cst_23 = arith.constant dense<0.000000e+00> : vector<64x64xf32>
    %37 = tpu.matmul %34, %36, %cst_23 {dimension_numbers = #tpu.dot_dimension_numbers<[1], [0], [0], [1], [0, 0, 1, 1], [], []>} : vector<64x64xf32>, vector<64x64xf32>, vector<64x64xf32> -> vector<64x64xf32>
    %38 = arith.addf %1, %37 : vector<64x64xf32>
    %c0_24 = arith.constant 0 : index
    %c0_25 = arith.constant 0 : index
    %c0_26 = arith.constant 0 : index
    %39 = vector.load %arg7[%c0_24, %c0_25, %c0_26] : memref<1x1x64xf32, #tpu.memory_space<vmem>>, vector<1x1x64xf32>
    %40 = vector.shape_cast %39 : vector<1x1x64xf32> to vector<1x64xf32>
    %41 = vector.broadcast %40 : vector<1x64xf32> to vector<64x64xf32>
    %42 = arith.addf %38, %41 : vector<64x64xf32>
    %43 = vector.extract_strided_slice %42 {offsets = [0, 0], sizes = [32, 64], strides = [1, 1]} : vector<64x64xf32> to vector<32x64xf32>
    %c0_27 = arith.constant 0 : index
    %c0_28 = arith.constant 0 : index
    %44 = vector.load %arg13[%c0_27, %c0_28] : memref<32x128xf32, #tpu.memory_space<vmem>>, vector<32x64xf32>
    tpu.vector_store %arg13[%c0_27, %c0_28], %43 {strides = array<i32>} : memref<32x128xf32, #tpu.memory_space<vmem>>, vector<32x64xf32>,
    %45 = vector.extract_strided_slice %42 {offsets = [32, 0], sizes = [32, 64], strides = [1, 1]} : vector<64x64xf32> to vector<32x64xf32>
    %c0_29 = arith.constant 0 : index
    %c64 = arith.constant 64 : index
    %46 = vector.load %arg13[%c0_29, %c64] : memref<32x128xf32, #tpu.memory_space<vmem>>, vector<32x64xf32>
    tpu.vector_store %arg13[%c0_29, %c64], %45 {strides = array<i32>} : memref<32x128xf32, #tpu.memory_space<vmem>>, vector<32x64xf32>,
    %c0_30 = arith.constant 0 : index
    %c0_31 = arith.constant 0 : index
    %47 = vector.load %arg8[%c0_30, %c0_31] : memref<16x32xf32, #tpu.memory_space<vmem>>, vector<16x32xf32>
    %c0_32 = arith.constant 0 : index
    %c0_33 = arith.constant 0 : index
    %48 = vector.load %arg13[%c0_32, %c0_33] : memref<32x128xf32, #tpu.memory_space<vmem>>, vector<32x128xf32>
    %cst_34 = arith.constant dense<0.000000e+00> : vector<16x128xf32>
    %49 = tpu.matmul %47, %48, %cst_34 {dimension_numbers = #tpu.dot_dimension_numbers<[1], [0], [0], [1], [0, 0, 1, 1], [], []>} : vector<16x32xf32>, vector<32x128xf32>, vector<16x128xf32> -> vector<16x128xf32>
    %c0_35 = arith.constant 0 : index
    %c0_36 = arith.constant 0 : index
    %50 = vector.load %arg9[%c0_35, %c0_36] : memref<16x1xf32, #tpu.memory_space<vmem>>, vector<16x1xf32>
    %51 = vector.broadcast %50 : vector<16x1xf32> to vector<16x128xf32>
    %52 = arith.addf %49, %51 : vector<16x128xf32>
    %c0_37 = arith.constant 0 : index
    %c0_38 = arith.constant 0 : index
    %53 = vector.load %arg10[%c0_37, %c0_38] : memref<4x64xf32, #tpu.memory_space<vmem>>, vector<4x64xf32>
    %c0_39 = arith.constant 0 : index
    %c0_40 = arith.constant 0 : index
    %54 = vector.load %arg11[%c0_39, %c0_40] : memref<4x1xf32, #tpu.memory_space<vmem>>, vector<4x1xf32>
    %55 = vector.extract_strided_slice %52 {offsets = [0, 0], sizes = [16, 64], strides = [1, 1]} : vector<16x128xf32> to vector<16x64xf32>
    %cst_41 = arith.constant dense<0.000000e+00> : vector<4x16xf32>
    %56 = tpu.matmul %53, %55, %cst_41 {dimension_numbers = #tpu.dot_dimension_numbers<[1], [1], [0], [0], [0, 0, 1, 0], [], []>} : vector<4x64xf32>, vector<16x64xf32>, vector<4x16xf32> -> vector<4x16xf32>
    %57 = vector.broadcast %54 : vector<4x1xf32> to vector<4x16xf32>
    %58 = arith.addf %56, %57 : vector<4x16xf32>
    %59 = arith.mulf %58, %58 : vector<4x16xf32>
    %cst_42 = arith.constant dense<0.000000e+00> : vector<4xf32>
    %60 = vector.multi_reduction <add>, %59, %cst_42 [1] : vector<4x16xf32> to vector<4xf32>
    %61 = vector.shape_cast %60 : vector<4xf32> to vector<4x1xf32>
    %cst_43 = arith.constant dense<0.000000e+00> : vector<1xf32>
    %62 = vector.multi_reduction <add>, %61, %cst_43 [0] : vector<4x1xf32> to vector<1xf32>
    %63 = vector.shape_cast %62 : vector<1xf32> to vector<1x1xf32>
    %cst_44 = arith.constant 1.000000e-24 : f32
    %64 = vector.broadcast %cst_44 : f32 to vector<1x1xf32>
    %65 = arith.maximumf %63, %64 : vector<1x1xf32>
    %66 = math.rsqrt %65 : vector<1x1xf32>
    %67 = vector.broadcast %66 : vector<1x1xf32> to vector<4x16xf32>
    %68 = arith.mulf %58, %67 : vector<4x16xf32>
    %c0_45 = arith.constant 0 : index
    %c0_46 = arith.constant 0 : index
    %c0_47 = arith.constant 0 : index
    %69 = vector.load %arg12[%c0_45, %c0_46, %c0_47] : memref<2x4x16xf32, #tpu.memory_space<vmem>>, vector<1x4x16xf32>
    %70 = vector.shape_cast %69 : vector<1x4x16xf32> to vector<4x16xf32>
    %71 = vector.shape_cast %68 : vector<4x16xf32> to vector<1x4x16xf32>
    tpu.vector_store %arg12[%c0_45, %c0_46, %c0_47], %71 {strides = array<i32>} : memref<2x4x16xf32, #tpu.memory_space<vmem>>, vector<1x4x16xf32>,
    %72 = vector.extract_strided_slice %52 {offsets = [0, 64], sizes = [16, 64], strides = [1, 1]} : vector<16x128xf32> to vector<16x64xf32>
    %cst_48 = arith.constant dense<0.000000e+00> : vector<4x16xf32>
    %73 = tpu.matmul %53, %72, %cst_48 {dimension_numbers = #tpu.dot_dimension_numbers<[1], [1], [0], [0], [0, 0, 1, 0], [], []>} : vector<4x64xf32>, vector<16x64xf32>, vector<4x16xf32> -> vector<4x16xf32>
    %74 = vector.broadcast %54 : vector<4x1xf32> to vector<4x16xf32>
    %75 = arith.addf %73, %74 : vector<4x16xf32>
    %76 = arith.mulf %75, %75 : vector<4x16xf32>
    %cst_49 = arith.constant dense<0.000000e+00> : vector<4xf32>
    %77 = vector.multi_reduction <add>, %76, %cst_49 [1] : vector<4x16xf32> to vector<4xf32>
    %78 = vector.shape_cast %77 : vector<4xf32> to vector<4x1xf32>
    %cst_50 = arith.constant dense<0.000000e+00> : vector<1xf32>
    %79 = vector.multi_reduction <add>, %78, %cst_50 [0] : vector<4x1xf32> to vector<1xf32>
    %80 = vector.shape_cast %79 : vector<1xf32> to vector<1x1xf32>
    %cst_51 = arith.constant 1.000000e-24 : f32
    %81 = vector.broadcast %cst_51 : f32 to vector<1x1xf32>
    %82 = arith.maximumf %80, %81 : vector<1x1xf32>
    %83 = math.rsqrt %82 : vector<1x1xf32>
    %84 = vector.broadcast %83 : vector<1x1xf32> to vector<4x16xf32>
    %85 = arith.mulf %75, %84 : vector<4x16xf32>
    %c1 = arith.constant 1 : index
    %c0_52 = arith.constant 0 : index
    %c0_53 = arith.constant 0 : index
    %86 = vector.load %arg12[%c1, %c0_52, %c0_53] : memref<2x4x16xf32, #tpu.memory_space<vmem>>, vector<1x4x16xf32>
    %87 = vector.shape_cast %86 : vector<1x4x16xf32> to vector<4x16xf32>
    %88 = vector.shape_cast %85 : vector<4x16xf32> to vector<1x4x16xf32>
    tpu.vector_store %arg12[%c1, %c0_52, %c0_53], %88 {strides = array<i32>} : memref<2x4x16xf32, #tpu.memory_space<vmem>>, vector<1x4x16xf32>,
    return
  }
  func.func @transform_0(%arg0: i32) -> (i32, i32, i32) {
    %c0_i32 = arith.constant 0 : i32
    %c0_i32_0 = arith.constant 0 : i32
    %c0_i32_1 = arith.constant 0 : i32
    return %arg0, %c0_i32, %c0_i32_0 : i32, i32, i32
  }
  func.func @transform_1(%arg0: i32) -> (i32, i32, i32) {
    %c0_i32 = arith.constant 0 : i32
    %c0_i32_0 = arith.constant 0 : i32
    %c0_i32_1 = arith.constant 0 : i32
    %c0_i32_2 = arith.constant 0 : i32
    return %c0_i32, %c0_i32_0, %c0_i32_1 : i32, i32, i32
  }
  func.func @transform_2(%arg0: i32) -> (i32, i32, i32) {
    %c0_i32 = arith.constant 0 : i32
    %c0_i32_0 = arith.constant 0 : i32
    %c0_i32_1 = arith.constant 0 : i32
    %c0_i32_2 = arith.constant 0 : i32
    return %c0_i32, %c0_i32_0, %c0_i32_1 : i32, i32, i32
  }
  func.func @transform_3(%arg0: i32) -> (i32, i32, i32) {
    %c0_i32 = arith.constant 0 : i32
    %c0_i32_0 = arith.constant 0 : i32
    %c0_i32_1 = arith.constant 0 : i32
    %c0_i32_2 = arith.constant 0 : i32
    return %c0_i32, %c0_i32_0, %c0_i32_1 : i32, i32, i32
  }
  func.func @transform_4(%arg0: i32) -> (i32, i32, i32) {
    %c0_i32 = arith.constant 0 : i32
    %c0_i32_0 = arith.constant 0 : i32
    %c0_i32_1 = arith.constant 0 : i32
    %c0_i32_2 = arith.constant 0 : i32
    return %c0_i32, %c0_i32_0, %c0_i32_1 : i32, i32, i32
  }
  func.func @transform_5(%arg0: i32) -> (i32, i32, i32) {
    %c0_i32 = arith.constant 0 : i32
    %c0_i32_0 = arith.constant 0 : i32
    %c0_i32_1 = arith.constant 0 : i32
    %c0_i32_2 = arith.constant 0 : i32
    return %c0_i32, %c0_i32_0, %c0_i32_1 : i32, i32, i32
  }
  func.func @transform_6(%arg0: i32) -> (i32, i32, i32) {
    %c0_i32 = arith.constant 0 : i32
    %c0_i32_0 = arith.constant 0 : i32
    %c0_i32_1 = arith.constant 0 : i32
    %c0_i32_2 = arith.constant 0 : i32
    return %c0_i32, %c0_i32_0, %c0_i32_1 : i32, i32, i32
  }
  func.func @transform_7(%arg0: i32) -> (i32, i32) {
    %c0_i32 = arith.constant 0 : i32
    %c0_i32_0 = arith.constant 0 : i32
    %c0_i32_1 = arith.constant 0 : i32
    return %c0_i32, %c0_i32_0 : i32, i32
  }
  func.func @transform_8(%arg0: i32) -> (i32, i32) {
    %c0_i32 = arith.constant 0 : i32
    %c0_i32_0 = arith.constant 0 : i32
    %c0_i32_1 = arith.constant 0 : i32
    return %c0_i32, %c0_i32_0 : i32, i32
  }
  func.func @transform_9(%arg0: i32) -> (i32, i32) {
    %c0_i32 = arith.constant 0 : i32
    %c0_i32_0 = arith.constant 0 : i32
    %c0_i32_1 = arith.constant 0 : i32
    return %c0_i32, %c0_i32_0 : i32, i32
  }
  func.func @transform_10(%arg0: i32) -> (i32, i32) {
    %c0_i32 = arith.constant 0 : i32
    %c0_i32_0 = arith.constant 0 : i32
    %c0_i32_1 = arith.constant 0 : i32
    return %c0_i32, %c0_i32_0 : i32, i32
  }
  func.func @transform_11(%arg0: i32) -> (i32, i32, i32) {
    %c0_i32 = arith.constant 0 : i32
    %c0_i32_0 = arith.constant 0 : i32
    %c0_i32_1 = arith.constant 0 : i32
    return %arg0, %c0_i32, %c0_i32_0 : i32, i32, i32
  }
}

</mosaic_0001>

<llo_original>
// kernel: tpu_custom_call.1
$region0: #{tpu_custom_call.1}
  #allocation0 [shape = 'u32[]', space=smem, size = 0x4, offset = 0x4, fixed_abs, tag = 'smem constant byte address 0x4 - core index']
  #allocation1 [shape = 'u32[144,128]{1,0:T(1,128)}', space=vmem, size = 0x12000, scoped, tag = 'internal scratch']
  #allocation2 [shape = 'f32[32,128]{1,0:T(8,128)}', space=vmem, size = 0x4000, scoped, tag = 'scratch operand']
  %s0 = inlined_call_operand.hbm [shape: f32[2,32,64], index: 0, kind: input, shape index: {}]
  %s1 = inlined_call_operand.vmem [shape: f32[1,1,64], index: 1, kind: input, shape index: {}]
  %s2 = inlined_call_operand.vmem [shape: f32[1,1,64], index: 2, kind: input, shape index: {}]
  %s3 = inlined_call_operand.hbm [shape: f32[1,64,64], index: 3, kind: input, shape index: {}]
  %s4 = inlined_call_operand.vmem [shape: f32[1,1,64], index: 4, kind: input, shape index: {}]
  %s5 = inlined_call_operand.hbm [shape: f32[1,64,64], index: 5, kind: input, shape index: {}]
  %s6 = inlined_call_operand.vmem [shape: f32[1,1,64], index: 6, kind: input, shape index: {}]
  %s7 = inlined_call_operand.vmem [shape: f32[16,32], index: 7, kind: input, shape index: {}]
  %s8 = inlined_call_operand.vmem [shape: f32[16,1], index: 8, kind: input, shape index: {}]
  %s9 = inlined_call_operand.vmem [shape: f32[4,64], index: 9, kind: input, shape index: {}]
  %s10 = inlined_call_operand.vmem [shape: f32[4,1], index: 10, kind: input, shape index: {}]
  %s11 = inlined_call_operand.hbm [shape: f32[2,4,16], index: 11, kind: output, shape index: {}]
  %s12 = sld [smem:[#allocation0]]
  $region66: #{tpu_custom_call.1} parent=0
    _
  %s14 = ssub.s32 1, %s12
  %s15 = scalar_select 0, %s14, %s12
  $region1: #{tpu_custom_call.1} parent=0
    #allocation3 [shape = 'u8[32768]{0}', space=vmem, size = 0x8000, scoped, tag = 'input window, operand 0, single buffered']
    #allocation4 [shape = 's32[1]{0}', space=sflag, size = 0x4, scoped, tag = 'scoped memory for tpu_custom_call.1']
    #allocation5 [shape = 's32[1]{0}', space=sflag, size = 0x4, scoped, tag = 'scoped memory for tpu_custom_call.1']
    #allocation6 [shape = 'u8[32768]{0}', space=vmem, size = 0x8000, scoped, tag = 'input window, operand 3, single buffered']
    #allocation7 [shape = 's32[1]{0}', space=sflag, size = 0x4, scoped, tag = 'scoped memory for tpu_custom_call.1']
    #allocation8 [shape = 'u8[32768]{0}', space=vmem, size = 0x8000, scoped, tag = 'input window, operand 5, single buffered']
    #allocation9 [shape = 'u8[4096]{0}', space=vmem, size = 0x1000, scoped, tag = 'output window, operand 0, single buffered']
    %16 = vsyncpa [#allocation4], 0
    %17 = vsyncpa [#allocation7], 0
    %18 = vsyncpa [#allocation5], 0
    // Predicated region
    $region2: #{tpu_custom_call.1} parent=1 // pred_check
      _
    $region3: #{tpu_custom_call.1} parent=1 // pred_check_branch
      %20 = sbr.rel (0) target = $region5
    $region4: #{tpu_custom_call.1} parent=1 // pred_region
      %s22 = ssub.s32 1024, 1024
      %23 = vsyncadd [#allocation4], %s22
      %s24 = sshll.u32 [#allocation3], 4
      %s25 = int_to_ptr.vmem [resolvable:$true] %s24
      %30 = dma.hbm_to_vmem [thread:$0]  %s0, 1024, %s25, [#allocation4], 128, 128, 8
    $region5: #{tpu_custom_call.1} parent=1 // pred_fallthru
      _
    // Predicated region
    $region6: #{tpu_custom_call.1} parent=1 // pred_check
      _
    $region7: #{tpu_custom_call.1} parent=1 // pred_check_branch
      %32 = sbr.rel (0) target = $region9
    $region8: #{tpu_custom_call.1} parent=1 // pred_region
      _
    $region9: #{tpu_custom_call.1} parent=1 // pred_fallthru
      _
    // Predicated region
    $region10: #{tpu_custom_call.1} parent=1 // pred_check
      _
    $region11: #{tpu_custom_call.1} parent=1 // pred_check_branch
      %34 = sbr.rel (0) target = $region13
    $region12: #{tpu_custom_call.1} parent=1 // pred_region
      _
    $region13: #{tpu_custom_call.1} parent=1 // pred_fallthru
      _
    // Predicated region
    $region14: #{tpu_custom_call.1} parent=1 // pred_check
      _
    $region15: #{tpu_custom_call.1} parent=1 // pred_check_branch
      %36 = sbr.rel (0) target = $region17
    $region16: #{tpu_custom_call.1} parent=1 // pred_region
      %s38 = ssub.s32 1024, 1024
      %39 = vsyncadd [#allocation7], %s38
      %s40 = sshll.u32 [#allocation6], 4
      %s41 = int_to_ptr.vmem [resolvable:$true] %s40
      %46 = dma.hbm_to_vmem [thread:$0]  %s3, 1024, %s41, [#allocation7], 128, 128, 8
    $region17: #{tpu_custom_call.1} parent=1 // pred_fallthru
      _
    // Predicated region
    $region18: #{tpu_custom_call.1} parent=1 // pred_check
      _
    $region19: #{tpu_custom_call.1} parent=1 // pred_check_branch
      %48 = sbr.rel (0) target = $region21
    $region20: #{tpu_custom_call.1} parent=1 // pred_region
      _
    $region21: #{tpu_custom_call.1} parent=1 // pred_fallthru
      _
    // Predicated region
    $region22: #{tpu_custom_call.1} parent=1 // pred_check
      _
    $region23: #{tpu_custom_call.1} parent=1 // pred_check_branch
      %50 = sbr.rel (0) target = $region25
    $region24: #{tpu_custom_call.1} parent=1 // pred_region
      %s52 = ssub.s32 1024, 1024
      %53 = vsyncadd [#allocation7], %s52
      %s54 = sshll.u32 [#allocation8], 4
      %s55 = int_to_ptr.vmem [resolvable:$true] %s54
      %60 = dma.hbm_to_vmem [thread:$0]  %s5, 1024, %s55, [#allocation7], 128, 128, 8
    $region25: #{tpu_custom_call.1} parent=1 // pred_fallthru
      _
    // Predicated region
    $region26: #{tpu_custom_call.1} parent=1 // pred_check
      _
    $region27: #{tpu_custom_call.1} parent=1 // pred_check_branch
      %62 = sbr.rel (0) target = $region29
    $region28: #{tpu_custom_call.1} parent=1 // pred_region
      _
    $region29: #{tpu_custom_call.1} parent=1 // pred_fallthru
      _
    // Predicated region
    $region30: #{tpu_custom_call.1} parent=1 // pred_check
      _
    $region31: #{tpu_custom_call.1} parent=1 // pred_check_branch
      %64 = sbr.rel (0) target = $region33
    $region32: #{tpu_custom_call.1} parent=1 // pred_region
      _
    $region33: #{tpu_custom_call.1} parent=1 // pred_fallthru
      _
    // Predicated region
    $region34: #{tpu_custom_call.1} parent=1 // pred_check
      _
    $region35: #{tpu_custom_call.1} parent=1 // pred_check_branch
      %66 = sbr.rel (0) target = $region37
    $region36: #{tpu_custom_call.1} parent=1 // pred_region
      _
    $region37: #{tpu_custom_call.1} parent=1 // pred_fallthru
      _
    // Predicated region
    $region38: #{tpu_custom_call.1} parent=1 // pred_check
      _
    $region39: #{tpu_custom_call.1} parent=1 // pred_check_branch
      %68 = sbr.rel (0) target = $region41
    $region40: #{tpu_custom_call.1} parent=1 // pred_region
      _
    $region41: #{tpu_custom_call.1} parent=1 // pred_fallthru
      _
    // Predicated region
    $region42: #{tpu_custom_call.1} parent=1 // pred_check
      _
    $region43: #{tpu_custom_call.1} parent=1 // pred_check_branch
      %70 = sbr.rel (0) target = $region45
    $region44: #{tpu_custom_call.1} parent=1 // pred_region
      _
    $region45: #{tpu_custom_call.1} parent=1 // pred_fallthru
      _
    // Predicated region
    $region46: #{tpu_custom_call.1} parent=1 // pred_check
      _
    $region47: #{tpu_custom_call.1} parent=1 // pred_check_branch
      %72 = sbr.rel (0) target = $region49
    $region48: #{tpu_custom_call.1} parent=1 // pred_region
      %73 = dma.done [#allocation4], 1024
    $region49: #{tpu_custom_call.1} parent=1 // pred_fallthru
      _
    // Predicated region
    $region50: #{tpu_custom_call.1} parent=1 // pred_check
      _
    $region51: #{tpu_custom_call.1} parent=1 // pred_check_branch
      %75 = sbr.rel (0) target = $region53
    $region52: #{tpu_custom_call.1} parent=1 // pred_region
      %76 = dma.done [#allocation7], 1024
    $region53: #{tpu_custom_call.1} parent=1 // pred_fallthru
      _
    // Predicated region
    $region54: #{tpu_custom_call.1} parent=1 // pred_check
      _
    $region55: #{tpu_custom_call.1} parent=1 // pred_check_branch
      %78 = sbr.rel (0) target = $region57
    $region56: #{tpu_custom_call.1} parent=1 // pred_region
      %79 = dma.done [#allocation7], 1024
    $region57: #{tpu_custom_call.1} parent=1 // pred_fallthru
      _
    %v80 = vld [vmem:[#allocation3] sm:$0xff]
    %v81 = vld [vmem:[#allocation3 + $0x8] sm:$0xff]
    %v82 = vld [vmem:[#allocation3 + $0x10] sm:$0xff]
    %v83 = vld [vmem:[#allocation3 + $0x18] sm:$0xff]
    %v84 = vld [vmem:[#allocation3 + $0x20] sm:$0xff]
    %v85 = vld [vmem:[#allocation3 + $0x28] sm:$0xff]
    %v86 = vld [vmem:[#allocation3 + $0x30] sm:$0xff]
    %v87 = vld [vmem:[#allocation3 + $0x38] sm:$0xff]
    %vm88 = vcmask 523264
    %v89 = vsel %vm88, %v80, 0.0
    %90 = vadd.xlane.f32.xlu0 %v89
    %v91 = vpop.xlane.xlu0 %90
    %v92 = vsel %vm88, %v81, 0.0
    %93 = vadd.xlane.f32.xlu0 %v92
    %v94 = vpop.xlane.xlu0 %93
    %v95 = vsel %vm88, %v82, 0.0
    %96 = vadd.xlane.f32.xlu0 %v95
    %v97 = vpop.xlane.xlu0 %96
    %v98 = vsel %vm88, %v83, 0.0
    %99 = vadd.xlane.f32.xlu0 %v98
    %v100 = vpop.xlane.xlu0 %99
    %v101 = vsel %vm88, %v84, 0.0
    %102 = vadd.xlane.f32.xlu0 %v101
    %v103 = vpop.xlane.xlu0 %102
    %v104 = vsel %vm88, %v85, 0.0
    %105 = vadd.xlane.f32.xlu0 %v104
    %v106 = vpop.xlane.xlu0 %105
    %v107 = vsel %vm88, %v86, 0.0
    %108 = vadd.xlane.f32.xlu0 %v107
    %v109 = vpop.xlane.xlu0 %108
    %v110 = vsel %vm88, %v87, 0.0
    %111 = vadd.xlane.f32.xlu0 %v110
    %v112 = vpop.xlane.xlu0 %111
    %v113 = vrcp.pop 64.0
    %v114 = vmul.f32 %v91, %v113
    %v115 = vmul.f32 %v94, %v113
    %v116 = vmul.f32 %v97, %v113
    %v117 = vmul.f32 %v100, %v113
    %v118 = vmul.f32 %v103, %v113
    %v119 = vmul.f32 %v106, %v113
    %v120 = vmul.f32 %v109, %v113
    %v121 = vmul.f32 %v112, %v113
    %v122 = vsub.f32 %v80, %v114
    %v123 = vsub.f32 %v81, %v115
    %v124 = vsub.f32 %v82, %v116
    %v125 = vsub.f32 %v83, %v117
    %v126 = vsub.f32 %v84, %v118
    %v127 = vsub.f32 %v85, %v119
    %v128 = vsub.f32 %v86, %v120
    %v129 = vsub.f32 %v87, %v121
    %v130 = vmul.f32 %v122, %v122
    %v131 = vmul.f32 %v123, %v123
    %v132 = vmul.f32 %v124, %v124
    %v133 = vmul.f32 %v125, %v125
    %v134 = vmul.f32 %v126, %v126
    %v135 = vmul.f32 %v127, %v127
    %v136 = vmul.f32 %v128, %v128
    %v137 = vmul.f32 %v129, %v129
    %v138 = vsel %vm88, %v130, 0.0
    %139 = vadd.xlane.f32.xlu0 %v138
    %v140 = vpop.xlane.xlu0 %139
    %v141 = vsel %vm88, %v131, 0.0
    %142 = vadd.xlane.f32.xlu0 %v141
    %v143 = vpop.xlane.xlu0 %142
    %v144 = vsel %vm88, %v132, 0.0
    %145 = vadd.xlane.f32.xlu0 %v144
    %v146 = vpop.xlane.xlu0 %145
    %v147 = vsel %vm88, %v133, 0.0
    %148 = vadd.xlane.f32.xlu0 %v147
    %v149 = vpop.xlane.xlu0 %148
    %v150 = vsel %vm88, %v134, 0.0
    %151 = vadd.xlane.f32.xlu0 %v150
    %v152 = vpop.xlane.xlu0 %151
    %v153 = vsel %vm88, %v135, 0.0
    %154 = vadd.xlane.f32.xlu0 %v153
    %v155 = vpop.xlane.xlu0 %154
    %v156 = vsel %vm88, %v136, 0.0
    %157 = vadd.xlane.f32.xlu0 %v156
    %v158 = vpop.xlane.xlu0 %157
    %v159 = vsel %vm88, %v137, 0.0
    %160 = vadd.xlane.f32.xlu0 %v159
    %v161 = vpop.xlane.xlu0 %160
    %v162 = vmul.f32 %v140, %v113
    %v163 = vmul.f32 %v143, %v113
    %v164 = vmul.f32 %v146, %v113
    %v165 = vmul.f32 %v149, %v113
    %v166 = vmul.f32 %v152, %v113
    %v167 = vmul.f32 %v155, %v113
    %v168 = vmul.f32 %v158, %v113
    %v169 = vmul.f32 %v161, %v113
    %v170 = vadd.f32 %v162, 1e-05
    %v171 = vadd.f32 %v163, 1e-05
    %v172 = vadd.f32 %v164, 1e-05
    %v173 = vadd.f32 %v165, 1e-05
    %v174 = vadd.f32 %v166, 1e-05
    %v175 = vadd.f32 %v167, 1e-05
    %v176 = vadd.f32 %v168, 1e-05
    %v177 = vadd.f32 %v169, 1e-05
    %v178 = vrsqrt.pop %v170
    %v179 = vrsqrt.pop %v171
    %v180 = vrsqrt.pop %v172
    %v181 = vrsqrt.pop %v173
    %v182 = vrsqrt.pop %v174
    %v183 = vrsqrt.pop %v175
    %v184 = vrsqrt.pop %v176
    %v185 = vrsqrt.pop %v177
    %v186 = vmul.f32 %v122, %v178
    %v187 = vmul.f32 %v123, %v179
    %v188 = vmul.f32 %v124, %v180
    %v189 = vmul.f32 %v125, %v181
    %v190 = vmul.f32 %v126, %v182
    %v191 = vmul.f32 %v127, %v183
    %v192 = vmul.f32 %v128, %v184
    %v193 = vmul.f32 %v129, %v185
    %v194 = vld [vmem:[%s1] sm:$0x1]
    %v196 = vlaneseq
    %v197 = vshrl.u32 %v196, 7
    %v198 = vsub.s32 0, %v197
    %v199 = vrot.slane %v194, %v198
    %v201 = vmul.f32 %v186, %v199
    %v202 = vmul.f32 %v187, %v199
    %v203 = vmul.f32 %v188, %v199
    %v204 = vmul.f32 %v189, %v199
    %v205 = vmul.f32 %v190, %v199
    %v206 = vmul.f32 %v191, %v199
    %v207 = vmul.f32 %v192, %v199
    %v208 = vmul.f32 %v193, %v199
    %v209 = vld [vmem:[%s2] sm:$0x1]
    %v211 = vlaneseq
    %v212 = vshrl.u32 %v211, 7
    %v213 = vsub.s32 0, %v212
    %v214 = vrot.slane %v209, %v213
    %v216 = vadd.f32 %v201, %v214
    %v217 = vadd.f32 %v202, %v214
    %v218 = vadd.f32 %v203, %v214
    %v219 = vadd.f32 %v204, %v214
    %v220 = vadd.f32 %v205, %v214
    %v221 = vadd.f32 %v206, %v214
    %v222 = vadd.f32 %v207, %v214
    %v223 = vadd.f32 %v208, %v214
    %v224 = vld [vmem:[#allocation6] sm:$0xff]
    %v225 = vld [vmem:[#allocation6 + $0x8] sm:$0xff]
    %v226 = vld [vmem:[#allocation6 + $0x10] sm:$0xff]
    %v227 = vld [vmem:[#allocation6 + $0x18] sm:$0xff]
    %v228 = vld [vmem:[#allocation6 + $0x20] sm:$0xff]
    %v229 = vld [vmem:[#allocation6 + $0x28] sm:$0xff]
    %v230 = vld [vmem:[#allocation6 + $0x30] sm:$0xff]
    %v231 = vld [vmem:[#allocation6 + $0x38] sm:$0xff]
    %v232 = vld [vmem:[%s4] sm:$0x1]
    %v234 = vlaneseq
    %v235 = vshrl.u32 %v234, 7
    %v236 = vsub.s32 0, %v235
    %v237 = vrot.slane %v232, %v236
    %v240 = vsel %vm88, %v216, 0
    %v243 = vsel %vm88, %v217, 0
    %v246 = vsel %vm88, %v218, 0
    %v249 = vsel %vm88, %v219, 0
    %v252 = vsel %vm88, %v220, 0
    %v255 = vsel %vm88, %v221, 0
    %v258 = vsel %vm88, %v222, 0
    %v261 = vsel %vm88, %v223, 0
    %263 = vmatprep.subr.mxu0 0.0
    %264 = vmatpush1.msra.mxu0 0.0
    %265 = vmatprep.subr.mxu0 0.0
    %266 = vmatpush1.msra.mxu0 0.0
    %267 = vmatprep.subr.mxu0 0.0
    %268 = vmatpush1.msra.mxu0 0.0
    %269 = vmatprep.subr.mxu0 0.0
    %270 = vmatpush1.msra.mxu0 0.0
    %271 = vmatprep.subr.mxu0 0.0
    %272 = vmatpush1.msra.mxu0 0.0
    %273 = vmatprep.subr.mxu0 0.0
    %274 = vmatpush1.msra.mxu0 0.0
    %275 = vmatprep.subr.mxu0 0.0
    %276 = vmatpush1.msra.mxu0 0.0
    %277 = vmatprep.subr.mxu0 0.0
    %278 = vmatpush1.msra.mxu0 0.0
    %279 = vmatprep.subr.mxu0 0.0
    %280 = vmatpush1.msra.mxu0 %v231
    %281 = vmatprep.subr.mxu0 0.0
    %282 = vmatpush1.msra.mxu0 %v230
    %283 = vmatprep.subr.mxu0 0.0
    %284 = vmatpush1.msra.mxu0 %v229
    %285 = vmatprep.subr.mxu0 0.0
    %286 = vmatpush1.msra.mxu0 %v228
    %287 = vmatprep.subr.mxu0 0.0
    %288 = vmatpush1.msra.mxu0 %v227
    %289 = vmatprep.subr.mxu0 0.0
    %290 = vmatpush1.msra.mxu0 %v226
    %291 = vmatprep.subr.mxu0 0.0
    %292 = vmatpush1.msra.mxu0 %v225
    %293 = vmatprep.subr.mxu0 0.0
    %294 = vmatpush1.msra.mxu0 %v224
    %295 = vmatprep.subr.mxu0 0.0
    %296 = vmatpush2.msra.mxu0 0.0
    %297 = vmatprep.subr.mxu0 0.0
    %298 = vmatpush2.msra.mxu0 0.0
    %299 = vmatprep.subr.mxu0 0.0
    %300 = vmatpush2.msra.mxu0 0.0
    %301 = vmatprep.subr.mxu0 0.0
    %302 = vmatpush2.msra.mxu0 0.0
    %303 = vmatprep.subr.mxu0 0.0
    %304 = vmatpush2.msra.mxu0 0.0
    %305 = vmatprep.subr.mxu0 0.0
    %306 = vmatpush2.msra.mxu0 0.0
    %307 = vmatprep.subr.mxu0 0.0
    %308 = vmatpush2.msra.mxu0 0.0
    %309 = vmatprep.subr.mxu0 0.0
    %310 = vmatpush2.msra.mxu0 0.0
    %311 = vmatprep.subr.mxu0 0.0
    %312 = vmatpush2.msra.mxu0 0.0
    %313 = vmatprep.subr.mxu0 0.0
    %314 = vmatpush2.msra.mxu0 0.0
    %315 = vmatprep.subr.mxu0 0.0
    %316 = vmatpush2.msra.mxu0 0.0
    %317 = vmatprep.subr.mxu0 0.0
    %318 = vmatpush2.msra.mxu0 0.0
    %319 = vmatprep.subr.mxu0 0.0
    %320 = vmatpush2.msra.mxu0 0.0
    %321 = vmatprep.subr.mxu0 0.0
    %322 = vmatpush2.msra.mxu0 0.0
    %323 = vmatprep.subr.mxu0 0.0
    %324 = vmatpush2.msra.mxu0 0.0
    %325 = vmatprep.subr.mxu0 0.0
    %326 = vmatpush2.msra.mxu0 0.0
    %327 = vmatprep.mubr.f32.mxu0 0.0
    %328 = vmatmul.mubr.f32.gmra.mxu0 %v240
    %v329 = vpop.f32.mrf.mxu0
    %v330 = vadd.f32 %v237, %v329
    %v331 = vpop.f32.mrf.mxu0
    %332 = vmatprep.mubr.f32.mxu0 0.0
    %333 = vmatmul.mubr.f32.gmra.mxu0 %v243
    %v334 = vpop.f32.mrf.mxu0
    %v335 = vadd.f32 %v237, %v334
    %v336 = vpop.f32.mrf.mxu0
    %337 = vmatprep.mubr.f32.mxu0 0.0
    %338 = vmatmul.mubr.f32.gmra.mxu0 %v246
    %v339 = vpop.f32.mrf.mxu0
    %v340 = vadd.f32 %v237, %v339
    %v341 = vpop.f32.mrf.mxu0
    %342 = vmatprep.mubr.f32.mxu0 0.0
    %343 = vmatmul.mubr.f32.gmra.mxu0 %v249
    %v344 = vpop.f32.mrf.mxu0
    %v345 = vadd.f32 %v237, %v344
    %v346 = vpop.f32.mrf.mxu0
    %347 = vmatprep.mubr.f32.mxu0 0.0
    %348 = vmatmul.mubr.f32.gmra.mxu0 %v252
    %v349 = vpop.f32.mrf.mxu0
    %v350 = vadd.f32 %v237, %v349
    %v351 = vpop.f32.mrf.mxu0
    %352 = vmatprep.mubr.f32.mxu0 0.0
    %353 = vmatmul.mubr.f32.gmra.mxu0 %v255
    %v354 = vpop.f32.mrf.mxu0
    %v355 = vadd.f32 %v237, %v354
    %v356 = vpop.f32.mrf.mxu0
    %357 = vmatprep.mubr.f32.mxu0 0.0
    %358 = vmatmul.mubr.f32.gmra.mxu0 %v258
    %v359 = vpop.f32.mrf.mxu0
    %v360 = vadd.f32 %v237, %v359
    %v361 = vpop.f32.mrf.mxu0
    %362 = vmatprep.mubr.f32.mxu0 0.0
    %363 = vmatmul.mubr.f32.gmra.mxu0 %v261
    %v364 = vpop.f32.mrf.mxu0
    %v365 = vadd.f32 %v237, %v364
    %v366 = vpop.f32.mrf.mxu0
    %367 = vdwg.mxu0
    %v368 = vmax.f32 %v330, 0.0
    %v369 = vmax.f32 %v335, 0.0
    %v370 = vmax.f32 %v340, 0.0
    %v371 = vmax.f32 %v345, 0.0
    %v372 = vmax.f32 %v350, 0.0
    %v373 = vmax.f32 %v355, 0.0
    %v374 = vmax.f32 %v360, 0.0
    %v375 = vmax.f32 %v365, 0.0
    %v376 = vld [vmem:[#allocation8] sm:$0xff]
    %v377 = vld [vmem:[#allocation8 + $0x8] sm:$0xff]
    %v378 = vld [vmem:[#allocation8 + $0x10] sm:$0xff]
    %v379 = vld [vmem:[#allocation8 + $0x18] sm:$0xff]
    %v380 = vld [vmem:[#allocation8 + $0x20] sm:$0xff]
    %v381 = vld [vmem:[#allocation8 + $0x28] sm:$0xff]
    %v382 = vld [vmem:[#allocation8 + $0x30] sm:$0xff]
    %v383 = vld [vmem:[#allocation8 + $0x38] sm:$0xff]
    %v385 = vsel %vm88, %v368, 0
    %v388 = vsel %vm88, %v369, 0
    %v391 = vsel %vm88, %v370, 0
    %v394 = vsel %vm88, %v371, 0
    %v397 = vsel %vm88, %v372, 0
    %v400 = vsel %vm88, %v373, 0
    %v403 = vsel %vm88, %v374, 0
    %v406 = vsel %vm88, %v375, 0
    %408 = vmatprep.subr.mxu0 0.0
    %409 = vmatpush1.msra.mxu0 0.0
    %410 = vmatprep.subr.mxu0 0.0
    %411 = vmatpush1.msra.mxu0 0.0
    %412 = vmatprep.subr.mxu0 0.0
    %413 = vmatpush1.msra.mxu0 0.0
    %414 = vmatprep.subr.mxu0 0.0
    %415 = vmatpush1.msra.mxu0 0.0
    %416 = vmatprep.subr.mxu0 0.0
    %417 = vmatpush1.msra.mxu0 0.0
    %418 = vmatprep.subr.mxu0 0.0
    %419 = vmatpush1.msra.mxu0 0.0
    %420 = vmatprep.subr.mxu0 0.0
    %421 = vmatpush1.msra.mxu0 0.0
    %422 = vmatprep.subr.mxu0 0.0
    %423 = vmatpush1.msra.mxu0 0.0
    %424 = vmatprep.subr.mxu0 0.0
    %425 = vmatpush1.msra.mxu0 %v383
    %426 = vmatprep.subr.mxu0 0.0
    %427 = vmatpush1.msra.mxu0 %v382
    %428 = vmatprep.subr.mxu0 0.0
    %429 = vmatpush1.msra.mxu0 %v381
    %430 = vmatprep.subr.mxu0 0.0
    %431 = vmatpush1.msra.mxu0 %v380
    %432 = vmatprep.subr.mxu0 0.0
    %433 = vmatpush1.msra.mxu0 %v379
    %434 = vmatprep.subr.mxu0 0.0
    %435 = vmatpush1.msra.mxu0 %v378
    %436 = vmatprep.subr.mxu0 0.0
    %437 = vmatpush1.msra.mxu0 %v377
    %438 = vmatprep.subr.mxu0 0.0
    %439 = vmatpush1.msra.mxu0 %v376
    %440 = vmatprep.subr.mxu0 0.0
    %441 = vmatpush2.msra.mxu0 0.0
    %442 = vmatprep.subr.mxu0 0.0
    %443 = vmatpush2.msra.mxu0 0.0
    %444 = vmatprep.subr.mxu0 0.0
    %445 = vmatpush2.msra.mxu0 0.0
    %446 = vmatprep.subr.mxu0 0.0
    %447 = vmatpush2.msra.mxu0 0.0
    %448 = vmatprep.subr.mxu0 0.0
    %449 = vmatpush2.msra.mxu0 0.0
    %450 = vmatprep.subr.mxu0 0.0
    %451 = vmatpush2.msra.mxu0 0.0
    %452 = vmatprep.subr.mxu0 0.0
    %453 = vmatpush2.msra.mxu0 0.0
    %454 = vmatprep.subr.mxu0 0.0
    %455 = vmatpush2.msra.mxu0 0.0
    %456 = vmatprep.subr.mxu0 0.0
    %457 = vmatpush2.msra.mxu0 0.0
    %458 = vmatprep.subr.mxu0 0.0
    %459 = vmatpush2.msra.mxu0 0.0
    %460 = vmatprep.subr.mxu0 0.0
    %461 = vmatpush2.msra.mxu0 0.0
    %462 = vmatprep.subr.mxu0 0.0
    %463 = vmatpush2.msra.mxu0 0.0
    %464 = vmatprep.subr.mxu0 0.0
    %465 = vmatpush2.msra.mxu0 0.0
    %466 = vmatprep.subr.mxu0 0.0
    %467 = vmatpush2.msra.mxu0 0.0
    %468 = vmatprep.subr.mxu0 0.0
    %469 = vmatpush2.msra.mxu0 0.0
    %470 = vmatprep.subr.mxu0 0.0
    %471 = vmatpush2.msra.mxu0 0.0
    %472 = vmatprep.mubr.f32.mxu0 0.0
    %473 = vmatmul.mubr.f32.gmra.mxu0 %v385
    %v474 = vpop.f32.mrf.mxu0
    %v475 = vadd.f32 0.0, %v474
    %v476 = vpop.f32.mrf.mxu0
    %477 = vmatprep.mubr.f32.mxu0 0.0
    %478 = vmatmul.mubr.f32.gmra.mxu0 %v388
    %v479 = vpop.f32.mrf.mxu0
    %v480 = vadd.f32 0.0, %v479
    %v481 = vpop.f32.mrf.mxu0
    %482 = vmatprep.mubr.f32.mxu0 0.0
    %483 = vmatmul.mubr.f32.gmra.mxu0 %v391
    %v484 = vpop.f32.mrf.mxu0
    %v485 = vadd.f32 0.0, %v484
    %v486 = vpop.f32.mrf.mxu0
    %487 = vmatprep.mubr.f32.mxu0 0.0
    %488 = vmatmul.mubr.f32.gmra.mxu0 %v394
    %v489 = vpop.f32.mrf.mxu0
    %v490 = vadd.f32 0.0, %v489
    %v491 = vpop.f32.mrf.mxu0
    %492 = vmatprep.mubr.f32.mxu0 0.0
    %493 = vmatmul.mubr.f32.gmra.mxu0 %v397
    %v494 = vpop.f32.mrf.mxu0
    %v495 = vadd.f32 0.0, %v494
    %v496 = vpop.f32.mrf.mxu0
    %497 = vmatprep.mubr.f32.mxu0 0.0
    %498 = vmatmul.mubr.f32.gmra.mxu0 %v400
    %v499 = vpop.f32.mrf.mxu0
    %v500 = vadd.f32 0.0, %v499
    %v501 = vpop.f32.mrf.mxu0
    %502 = vmatprep.mubr.f32.mxu0 0.0
    %503 = vmatmul.mubr.f32.gmra.mxu0 %v403
    %v504 = vpop.f32.mrf.mxu0
    %v505 = vadd.f32 0.0, %v504
    %v506 = vpop.f32.mrf.mxu0
    %507 = vmatprep.mubr.f32.mxu0 0.0
    %508 = vmatmul.mubr.f32.gmra.mxu0 %v406
    %v509 = vpop.f32.mrf.mxu0
    %v510 = vadd.f32 0.0, %v509
    %v511 = vpop.f32.mrf.mxu0
    %512 = vdwg.mxu0
    %v513 = vadd.f32 %v80, %v475
    %v514 = vadd.f32 %v81, %v480
    %v515 = vadd.f32 %v82, %v485
    %v516 = vadd.f32 %v83, %v490
    %v517 = vadd.f32 %v84, %v495
    %v518 = vadd.f32 %v85, %v500
    %v519 = vadd.f32 %v86, %v505
    %v520 = vadd.f32 %v87, %v510
    %v521 = vld [vmem:[%s6] sm:$0x1]
    %v523 = vlaneseq
    %v524 = vshrl.u32 %v523, 7
    %v525 = vsub.s32 0, %v524
    %v526 = vrot.slane %v521, %v525
    %v528 = vadd.f32 %v513, %v526
    %v529 = vadd.f32 %v514, %v526
    %v530 = vadd.f32 %v515, %v526
    %v531 = vadd.f32 %v516, %v526
    %v532 = vadd.f32 %v517, %v526
    %v533 = vadd.f32 %v518, %v526
    %v534 = vadd.f32 %v519, %v526
    %v535 = vadd.f32 %v520, %v526
    %536 = vst.msk [vmem:[#allocation2] sm:$0xff] %vm88, %v528
    %537 = vst.msk [vmem:[#allocation2 + $0x8] sm:$0xff] %vm88, %v529
    %538 = vst.msk [vmem:[#allocation2 + $0x10] sm:$0xff] %vm88, %v530
    %539 = vst.msk [vmem:[#allocation2 + $0x18] sm:$0xff] %vm88, %v531
    %544 = vrot.lane.b32.xlu0 %v532, 64
    %v545 = vpop.permute.xlu0 %544
    %546 = vrot.lane.b32.xlu0 %v533, 64
    %v547 = vpop.permute.xlu0 %546
    %548 = vrot.lane.b32.xlu0 %v534, 64
    %v549 = vpop.permute.xlu0 %548
    %550 = vrot.lane.b32.xlu0 %v535, 64
    %v551 = vpop.permute.xlu0 %550
    %vm556 = vcmask 1048064
    %557 = vst.msk [vmem:[#allocation2] sm:$0xff] %vm556, %v545
    %558 = vst.msk [vmem:[#allocation2 + $0x8] sm:$0xff] %vm556, %v547
    %559 = vst.msk [vmem:[#allocation2 + $0x10] sm:$0xff] %vm556, %v549
    %560 = vst.msk [vmem:[#allocation2 + $0x18] sm:$0xff] %vm556, %v551
    %v561 = vld [vmem:[%s7] sm:$0xff]
    %v562 = vld [vmem:[%s7 + $0x8] sm:$0xff]
    %v563 = vld [vmem:[#allocation2] sm:$0xff]
    %v564 = vld [vmem:[#allocation2 + $0x8] sm:$0xff]
    %v565 = vld [vmem:[#allocation2 + $0x10] sm:$0xff]
    %v566 = vld [vmem:[#allocation2 + $0x18] sm:$0xff]
    %v567 = vld [vmem:[%s8] sm:$0xff]
    %v568 = vld [vmem:[%s8 + $0x8] sm:$0xff]
    %570 = vset.pattern.permute.xlu0 0
    %571 = vperm.xlu0 %570, %v567
    %v572 = vpop.permute.xlu0 %571
    %575 = vset.pattern.permute.xlu0 0
    %576 = vperm.xlu0 %575, %v568
    %v577 = vpop.permute.xlu0 %576
    %vm579 = vcmask 261120
    %v581 = vsel %vm579, %v561, 0
    %v584 = vsel %vm579, %v562, 0
    %586 = vmatprep.subr.mxu0 0.0
    %587 = vmatpush1.msra.mxu0 0.0
    %588 = vmatprep.subr.mxu0 0.0
    %589 = vmatpush1.msra.mxu0 0.0
    %590 = vmatprep.subr.mxu0 0.0
    %591 = vmatpush1.msra.mxu0 0.0
    %592 = vmatprep.subr.mxu0 0.0
    %593 = vmatpush1.msra.mxu0 0.0
    %594 = vmatprep.subr.mxu0 0.0
    %595 = vmatpush1.msra.mxu0 0.0
    %596 = vmatprep.subr.mxu0 0.0
    %597 = vmatpush1.msra.mxu0 0.0
    %598 = vmatprep.subr.mxu0 0.0
    %599 = vmatpush1.msra.mxu0 0.0
    %600 = vmatprep.subr.mxu0 0.0
    %601 = vmatpush1.msra.mxu0 0.0
    %602 = vmatprep.subr.mxu0 0.0
    %603 = vmatpush1.msra.mxu0 0.0
    %604 = vmatprep.subr.mxu0 0.0
    %605 = vmatpush1.msra.mxu0 0.0
    %606 = vmatprep.subr.mxu0 0.0
    %607 = vmatpush1.msra.mxu0 0.0
    %608 = vmatprep.subr.mxu0 0.0
    %609 = vmatpush1.msra.mxu0 0.0
    %610 = vmatprep.subr.mxu0 0.0
    %611 = vmatpush1.msra.mxu0 %v566
    %612 = vmatprep.subr.mxu0 0.0
    %613 = vmatpush1.msra.mxu0 %v565
    %614 = vmatprep.subr.mxu0 0.0
    %615 = vmatpush1.msra.mxu0 %v564
    %616 = vmatprep.subr.mxu0 0.0
    %617 = vmatpush1.msra.mxu0 %v563
    %618 = vmatprep.subr.mxu0 0.0
    %619 = vmatpush2.msra.mxu0 0.0
    %620 = vmatprep.subr.mxu0 0.0
    %621 = vmatpush2.msra.mxu0 0.0
    %622 = vmatprep.subr.mxu0 0.0
    %623 = vmatpush2.msra.mxu0 0.0
    %624 = vmatprep.subr.mxu0 0.0
    %625 = vmatpush2.msra.mxu0 0.0
    %626 = vmatprep.subr.mxu0 0.0
    %627 = vmatpush2.msra.mxu0 0.0
    %628 = vmatprep.subr.mxu0 0.0
    %629 = vmatpush2.msra.mxu0 0.0
    %630 = vmatprep.subr.mxu0 0.0
    %631 = vmatpush2.msra.mxu0 0.0
    %632 = vmatprep.subr.mxu0 0.0
    %633 = vmatpush2.msra.mxu0 0.0
    %634 = vmatprep.subr.mxu0 0.0
    %635 = vmatpush2.msra.mxu0 0.0
    %636 = vmatprep.subr.mxu0 0.0
    %637 = vmatpush2.msra.mxu0 0.0
    %638 = vmatprep.subr.mxu0 0.0
    %639 = vmatpush2.msra.mxu0 0.0
    %640 = vmatprep.subr.mxu0 0.0
    %641 = vmatpush2.msra.mxu0 0.0
    %642 = vmatprep.subr.mxu0 0.0
    %643 = vmatpush2.msra.mxu0 0.0
    %644 = vmatprep.subr.mxu0 0.0
    %645 = vmatpush2.msra.mxu0 0.0
    %646 = vmatprep.subr.mxu0 0.0
    %647 = vmatpush2.msra.mxu0 0.0
    %648 = vmatprep.subr.mxu0 0.0
    %649 = vmatpush2.msra.mxu0 0.0
    %650 = vmatprep.mubr.f32.mxu0 0.0
    %651 = vmatmul.mubr.f32.gmra.mxu0 %v581
    %v652 = vpop.f32.mrf.mxu0
    %v653 = vadd.f32 %v572, %v652
    %v654 = vpop.f32.mrf.mxu0
    %655 = vmatprep.mubr.f32.mxu0 0.0
    %656 = vmatmul.mubr.f32.gmra.mxu0 %v584
    %v657 = vpop.f32.mrf.mxu0
    %v658 = vadd.f32 %v577, %v657
    %v659 = vpop.f32.mrf.mxu0
    %660 = vdwg.mxu0
    %v661 = vld [vmem:[%s9] sm:$0xf]
    %v662 = vld [vmem:[%s10] sm:$0xf]
    %664 = vset.pattern.permute.xlu0 0
    %665 = vperm.xlu0 %664, %v662
    %v666 = vpop.permute.xlu0 %665
    %v669 = vsel %vm88, %v661, 0
    %v672 = vsel %vm88, %v653, 0
    %v675 = vsel %vm88, %v658, 0
    %677 = vmatprep.subr.mxu0 0.0
    %678 = vmatpush1.xpose.msra.mxu0 0.0
    %679 = vmatprep.subr.mxu0 0.0
    %680 = vmatpush1.xpose.msra.mxu0 0.0
    %681 = vmatprep.subr.mxu0 0.0
    %682 = vmatpush1.xpose.msra.mxu0 0.0
    %683 = vmatprep.subr.mxu0 0.0
    %684 = vmatpush1.xpose.msra.mxu0 0.0
    %685 = vmatprep.subr.mxu0 0.0
    %686 = vmatpush1.xpose.msra.mxu0 0.0
    %687 = vmatprep.subr.mxu0 0.0
    %688 = vmatpush1.xpose.msra.mxu0 0.0
    %689 = vmatprep.subr.mxu0 0.0
    %690 = vmatpush1.xpose.msra.mxu0 0.0
    %691 = vmatprep.subr.mxu0 0.0
    %692 = vmatpush1.xpose.msra.mxu0 0.0
    %693 = vmatprep.subr.mxu0 0.0
    %694 = vmatpush1.xpose.msra.mxu0 0.0
    %695 = vmatprep.subr.mxu0 0.0
    %696 = vmatpush1.xpose.msra.mxu0 0.0
    %697 = vmatprep.subr.mxu0 0.0
    %698 = vmatpush1.xpose.msra.mxu0 0.0
    %699 = vmatprep.subr.mxu0 0.0
    %700 = vmatpush1.xpose.msra.mxu0 0.0
    %701 = vmatprep.subr.mxu0 0.0
    %702 = vmatpush1.xpose.msra.mxu0 0.0
    %703 = vmatprep.subr.mxu0 0.0
    %704 = vmatpush1.xpose.msra.mxu0 0.0
    %705 = vmatprep.subr.mxu0 0.0
    %706 = vmatpush1.xpose.msra.mxu0 %v675
    %707 = vmatprep.subr.mxu0 0.0
    %708 = vmatpush1.xpose.msra.mxu0 %v672
    %709 = vmatprep.subr.mxu0 0.0
    %710 = vmatpush2.xpose.msra.mxu0 0.0
    %711 = vmatprep.subr.mxu0 0.0
    %712 = vmatpush2.xpose.msra.mxu0 0.0
    %713 = vmatprep.subr.mxu0 0.0
    %714 = vmatpush2.xpose.msra.mxu0 0.0
    %715 = vmatprep.subr.mxu0 0.0
    %716 = vmatpush2.xpose.msra.mxu0 0.0
    %717 = vmatprep.subr.mxu0 0.0
    %718 = vmatpush2.xpose.msra.mxu0 0.0
    %719 = vmatprep.subr.mxu0 0.0
    %720 = vmatpush2.xpose.msra.mxu0 0.0
    %721 = vmatprep.subr.mxu0 0.0
    %722 = vmatpush2.xpose.msra.mxu0 0.0
    %723 = vmatprep.subr.mxu0 0.0
    %724 = vmatpush2.xpose.msra.mxu0 0.0
    %725 = vmatprep.subr.mxu0 0.0
    %726 = vmatpush2.xpose.msra.mxu0 0.0
    %727 = vmatprep.subr.mxu0 0.0
    %728 = vmatpush2.xpose.msra.mxu0 0.0
    %729 = vmatprep.subr.mxu0 0.0
    %730 = vmatpush2.xpose.msra.mxu0 0.0
    %731 = vmatprep.subr.mxu0 0.0
    %732 = vmatpush2.xpose.msra.mxu0 0.0
    %733 = vmatprep.subr.mxu0 0.0
    %734 = vmatpush2.xpose.msra.mxu0 0.0
    %735 = vmatprep.subr.mxu0 0.0
    %736 = vmatpush2.xpose.msra.mxu0 0.0
    %737 = vmatprep.subr.mxu0 0.0
    %738 = vmatpush2.xpose.msra.mxu0 0.0
    %739 = vmatprep.subr.mxu0 0.0
    %740 = vmatpush2.xpose.msra.mxu0 0.0
    %741 = vmatprep.mubr.f32.mxu0 0.0
    %742 = vmatmul.mubr.f32.gmra.mxu0 %v669
    %v743 = vpop.f32.mrf.mxu0
    %v744 = vadd.f32 %v666, %v743
    %v745 = vpop.f32.mrf.mxu0
    %746 = vdwg.mxu0
    %v747 = vmul.f32 %v744, %v744
    %vm748 = vcmask 125952
    %v749 = vsel %vm748, %v747, 0.0
    %750 = vadd.xlane.f32.xlu0 %v749
    %v751 = vpop.xlane.xlu0 %750
    %vm752 = vcmask 1043456
    %v753 = vsel %vm752, %v751, 0.0
    %v754 = vrot.slane %v753, 4
    %v755 = vadd.f32 %v753, %v754
    %v756 = vrot.slane %v755, 2
    %v757 = vadd.f32 %v755, %v756
    %v758 = vrot.slane %v757, 1
    %v759 = vadd.f32 %v757, %v758
    %v760 = vmax.f32 %v759, 1e-24
    %v761 = vrsqrt.pop %v760
    %v762 = vmul.f32 %v744, %v761
    %763 = vst.msk [vmem:[#allocation9] sm:$0xf] %vm748, %v762
    %764 = vrot.lane.b32.xlu0 %v653, 64
    %v765 = vpop.permute.xlu0 %764
    %766 = vrot.lane.b32.xlu0 %v658, 64
    %v767 = vpop.permute.xlu0 %766
    %v768 = vsel %vm88, %v765, 0
    %v770 = vsel %vm88, %v767, 0
    %772 = vmatprep.subr.mxu0 0.0
    %773 = vmatpush1.xpose.msra.mxu0 0.0
    %774 = vmatprep.subr.mxu0 0.0
    %775 = vmatpush1.xpose.msra.mxu0 0.0
    %776 = vmatprep.subr.mxu0 0.0
    %777 = vmatpush1.xpose.msra.mxu0 0.0
    %778 = vmatprep.subr.mxu0 0.0
    %779 = vmatpush1.xpose.msra.mxu0 0.0
    %780 = vmatprep.subr.mxu0 0.0
    %781 = vmatpush1.xpose.msra.mxu0 0.0
    %782 = vmatprep.subr.mxu0 0.0
    %783 = vmatpush1.xpose.msra.mxu0 0.0
    %784 = vmatprep.subr.mxu0 0.0
    %785 = vmatpush1.xpose.msra.mxu0 0.0
    %786 = vmatprep.subr.mxu0 0.0
    %787 = vmatpush1.xpose.msra.mxu0 0.0
    %788 = vmatprep.subr.mxu0 0.0
    %789 = vmatpush1.xpose.msra.mxu0 0.0
    %790 = vmatprep.subr.mxu0 0.0
    %791 = vmatpush1.xpose.msra.mxu0 0.0
    %792 = vmatprep.subr.mxu0 0.0
    %793 = vmatpush1.xpose.msra.mxu0 0.0
    %794 = vmatprep.subr.mxu0 0.0
    %795 = vmatpush1.xpose.msra.mxu0 0.0
    %796 = vmatprep.subr.mxu0 0.0
    %797 = vmatpush1.xpose.msra.mxu0 0.0
    %798 = vmatprep.subr.mxu0 0.0
    %799 = vmatpush1.xpose.msra.mxu0 0.0
    %800 = vmatprep.subr.mxu0 0.0
    %801 = vmatpush1.xpose.msra.mxu0 %v770
    %802 = vmatprep.subr.mxu0 0.0
    %803 = vmatpush1.xpose.msra.mxu0 %v768
    %804 = vmatprep.subr.mxu0 0.0
    %805 = vmatpush2.xpose.msra.mxu0 0.0
    %806 = vmatprep.subr.mxu0 0.0
    %807 = vmatpush2.xpose.msra.mxu0 0.0
    %808 = vmatprep.subr.mxu0 0.0
    %809 = vmatpush2.xpose.msra.mxu0 0.0
    %810 = vmatprep.subr.mxu0 0.0
    %811 = vmatpush2.xpose.msra.mxu0 0.0
    %812 = vmatprep.subr.mxu0 0.0
    %813 = vmatpush2.xpose.msra.mxu0 0.0
    %814 = vmatprep.subr.mxu0 0.0
    %815 = vmatpush2.xpose.msra.mxu0 0.0
    %816 = vmatprep.subr.mxu0 0.0
    %817 = vmatpush2.xpose.msra.mxu0 0.0
    %818 = vmatprep.subr.mxu0 0.0
    %819 = vmatpush2.xpose.msra.mxu0 0.0
    %820 = vmatprep.subr.mxu0 0.0
    %821 = vmatpush2.xpose.msra.mxu0 0.0
    %822 = vmatprep.subr.mxu0 0.0
    %823 = vmatpush2.xpose.msra.mxu0 0.0
    %824 = vmatprep.subr.mxu0 0.0
    %825 = vmatpush2.xpose.msra.mxu0 0.0
    %826 = vmatprep.subr.mxu0 0.0
    %827 = vmatpush2.xpose.msra.mxu0 0.0
    %828 = vmatprep.subr.mxu0 0.0
    %829 = vmatpush2.xpose.msra.mxu0 0.0
    %830 = vmatprep.subr.mxu0 0.0
    %831 = vmatpush2.xpose.msra.mxu0 0.0
    %832 = vmatprep.subr.mxu0 0.0
    %833 = vmatpush2.xpose.msra.mxu0 0.0
    %834 = vmatprep.subr.mxu0 0.0
    %835 = vmatpush2.xpose.msra.mxu0 0.0
    %836 = vmatprep.mubr.f32.mxu0 0.0
    %837 = vmatmul.mubr.f32.gmra.mxu0 %v669
    %v838 = vpop.f32.mrf.mxu0
    %v839 = vadd.f32 %v666, %v838
    %v840 = vpop.f32.mrf.mxu0
    %841 = vdwg.mxu0
    %v842 = vmul.f32 %v839, %v839
    %v843 = vsel %vm748, %v842, 0.0
    %844 = vadd.xlane.f32.xlu0 %v843
    %v845 = vpop.xlane.xlu0 %844
    %v846 = vsel %vm752, %v845, 0.0
    %v847 = vrot.slane %v846, 4
    %v848 = vadd.f32 %v846, %v847
    %v849 = vrot.slane %v848, 2
    %v850 = vadd.f32 %v848, %v849
    %v851 = vrot.slane %v850, 1
    %v852 = vadd.f32 %v850, %v851
    %v853 = vmax.f32 %v852, 1e-24
    %v854 = vrsqrt.pop %v853
    %v855 = vmul.f32 %v839, %v854
    %s856 = scalar_lea.vmem [#allocation9], 4
    %857 = vst.msk [vmem:[%s856] sm:$0xf] %vm748, %v855
    // Predicated region
    $region58: #{tpu_custom_call.1} parent=1 // pred_check
      _
    $region59: #{tpu_custom_call.1} parent=1 // pred_check_branch
      %859 = sbr.rel (0) target = $region61
    $region60: #{tpu_custom_call.1} parent=1 // pred_region
      %s861 = ssub.s32 128, 128
      %862 = vsyncadd [#allocation5], %s861
      %s863 = sshll.u32 [#allocation9], 4
      %s864 = int_to_ptr.vmem [resolvable:$true] %s863
      %869 = dma.vmem_to_hbm [thread:$0]  %s864, 128, %s11, [#allocation5], 64, 64, 4
    $region61: #{tpu_custom_call.1} parent=1 // pred_fallthru
      _
    // Predicated region
    $region62: #{tpu_custom_call.1} parent=1 // pred_check
      _
    $region63: #{tpu_custom_call.1} parent=1 // pred_check_branch
      %871 = sbr.rel (0) target = $region65
    $region64: #{tpu_custom_call.1} parent=1 // pred_region
      %872 = dma.done [#allocation5], 128
    $region65: #{tpu_custom_call.1} parent=1 // pred_fallthru
      _
    %873 = vsyncpa [#allocation4], 1
    %874 = vsyncpa [#allocation7], 1
    %875 = vsyncpa [#allocation5], 1

// kernel: tpu_custom_call.1
$region0: #{tpu_custom_call.1}
  #allocation0 [shape = 'u32[]', space=smem, size = 0x4, offset = 0x4, fixed_abs, tag = 'smem constant byte address 0x4 - core index']
  #allocation1 [shape = 'u32[144,128]{1,0:T(1,128)}', space=vmem, size = 0x12000, scoped, tag = 'internal scratch']
  #allocation2 [shape = 'f32[32,128]{1,0:T(8,128)}', space=vmem, size = 0x4000, scoped, tag = 'scratch operand']
  %s0 = inlined_call_operand.hbm [shape: f32[2,32,64], index: 0, kind: input, shape index: {}]
  %s1 = inlined_call_operand.vmem [shape: f32[1,1,64], index: 1, kind: input, shape index: {}]
  %s2 = inlined_call_operand.vmem [shape: f32[1,1,64], index: 2, kind: input, shape index: {}]
  %s3 = inlined_call_operand.hbm [shape: f32[1,64,64], index: 3, kind: input, shape index: {}]
  %s4 = inlined_call_operand.vmem [shape: f32[1,1,64], index: 4, kind: input, shape index: {}]
  %s5 = inlined_call_operand.hbm [shape: f32[1,64,64], index: 5, kind: input, shape index: {}]
  %s6 = inlined_call_operand.vmem [shape: f32[1,1,64], index: 6, kind: input, shape index: {}]
  %s7 = inlined_call_operand.vmem [shape: f32[16,32], index: 7, kind: input, shape index: {}]
  %s8 = inlined_call_operand.vmem [shape: f32[16,1], index: 8, kind: input, shape index: {}]
  %s9 = inlined_call_operand.vmem [shape: f32[4,64], index: 9, kind: input, shape index: {}]
  %s10 = inlined_call_operand.vmem [shape: f32[4,1], index: 10, kind: input, shape index: {}]
  %s11 = inlined_call_operand.hbm [shape: f32[2,4,16], index: 11, kind: output, shape index: {}]
  %s12 = sld [smem:[#allocation0]]
  $region66: #{tpu_custom_call.1} parent=0
    _
  %s14 = ssub.s32 1, %s12
  %s15 = scalar_select 0, %s14, %s12
  $region1: #{tpu_custom_call.1} parent=0
    #allocation3 [shape = 'u8[32768]{0}', space=vmem, size = 0x8000, scoped, tag = 'input window, operand 0, single buffered']
    #allocation4 [shape = 's32[1]{0}', space=sflag, size = 0x4, scoped, tag = 'scoped memory for tpu_custom_call.1']
    #allocation5 [shape = 's32[1]{0}', space=sflag, size = 0x4, scoped, tag = 'scoped memory for tpu_custom_call.1']
    #allocation6 [shape = 'u8[32768]{0}', space=vmem, size = 0x8000, scoped, tag = 'input window, operand 3, single buffered']
    #allocation7 [shape = 's32[1]{0}', space=sflag, size = 0x4, scoped, tag = 'scoped memory for tpu_custom_call.1']
    #allocation8 [shape = 'u8[32768]{0}', space=vmem, size = 0x8000, scoped, tag = 'input window, operand 5, single buffered']
    #allocation9 [shape = 'u8[4096]{0}', space=vmem, size = 0x1000, scoped, tag = 'output window, operand 0, single buffered']
    %16 = vsyncpa [#allocation4], 0
    %17 = vsyncpa [#allocation7], 0
    %18 = vsyncpa [#allocation5], 0
    // Predicated region
    $region2: #{tpu_custom_call.1} parent=1 // pred_check
      _
    $region3: #{tpu_custom_call.1} parent=1 // pred_check_branch
      %20 = sbr.rel (0) target = $region5
    $region4: #{tpu_custom_call.1} parent=1 // pred_region
      %s22 = ssub.s32 1024, 1024
      %23 = vsyncadd [#allocation4], %s22
      %s24 = sshll.u32 [#allocation3], 4
      %s25 = int_to_ptr.vmem [resolvable:$true] %s24
      %30 = dma.hbm_to_vmem [thread:$0]  %s0, 1024, %s25, [#allocation4], 128, 128, 8
    $region5: #{tpu_custom_call.1} parent=1 // pred_fallthru
      _
    // Predicated region
    $region6: #{tpu_custom_call.1} parent=1 // pred_check
      _
    $region7: #{tpu_custom_call.1} parent=1 // pred_check_branch
      %32 = sbr.rel (0) target = $region9
    $region8: #{tpu_custom_call.1} parent=1 // pred_region
      _
    $region9: #{tpu_custom_call.1} parent=1 // pred_fallthru
      _
    // Predicated region
    $region10: #{tpu_custom_call.1} parent=1 // pred_check
      _
    $region11: #{tpu_custom_call.1} parent=1 // pred_check_branch
      %34 = sbr.rel (0) target = $region13
    $region12: #{tpu_custom_call.1} parent=1 // pred_region
      _
    $region13: #{tpu_custom_call.1} parent=1 // pred_fallthru
      _
    // Predicated region
    $region14: #{tpu_custom_call.1} parent=1 // pred_check
      _
    $region15: #{tpu_custom_call.1} parent=1 // pred_check_branch
      %36 = sbr.rel (0) target = $region17
    $region16: #{tpu_custom_call.1} parent=1 // pred_region
      %s38 = ssub.s32 1024, 1024
      %39 = vsyncadd [#allocation7], %s38
      %s40 = sshll.u32 [#allocation6], 4
      %s41 = int_to_ptr.vmem [resolvable:$true] %s40
      %46 = dma.hbm_to_vmem [thread:$0]  %s3, 1024, %s41, [#allocation7], 128, 128, 8
    $region17: #{tpu_custom_call.1} parent=1 // pred_fallthru
      _
    // Predicated region
    $region18: #{tpu_custom_call.1} parent=1 // pred_check
      _
    $region19: #{tpu_custom_call.1} parent=1 // pred_check_branch
      %48 = sbr.rel (0) target = $region21
    $region20: #{tpu_custom_call.1} parent=1 // pred_region
      _
    $region21: #{tpu_custom_call.1} parent=1 // pred_fallthru
      _
    // Predicated region
    $region22: #{tpu_custom_call.1} parent=1 // pred_check
      _
    $region23: #{tpu_custom_call.1} parent=1 // pred_check_branch
      %50 = sbr.rel (0) target = $region25
    $region24: #{tpu_custom_call.1} parent=1 // pred_region
      %s52 = ssub.s32 1024, 1024
      %53 = vsyncadd [#allocation7], %s52
      %s54 = sshll.u32 [#allocation8], 4
      %s55 = int_to_ptr.vmem [resolvable:$true] %s54
      %60 = dma.hbm_to_vmem [thread:$0]  %s5, 1024, %s55, [#allocation7], 128, 128, 8
    $region25: #{tpu_custom_call.1} parent=1 // pred_fallthru
      _
    // Predicated region
    $region26: #{tpu_custom_call.1} parent=1 // pred_check
      _
    $region27: #{tpu_custom_call.1} parent=1 // pred_check_branch
      %62 = sbr.rel (0) target = $region29
    $region28: #{tpu_custom_call.1} parent=1 // pred_region
      _
    $region29: #{tpu_custom_call.1} parent=1 // pred_fallthru
      _
    // Predicated region
    $region30: #{tpu_custom_call.1} parent=1 // pred_check
      _
    $region31: #{tpu_custom_call.1} parent=1 // pred_check_branch
      %64 = sbr.rel (0) target = $region33
    $region32: #{tpu_custom_call.1} parent=1 // pred_region
      _
    $region33: #{tpu_custom_call.1} parent=1 // pred_fallthru
      _
    // Predicated region
    $region34: #{tpu_custom_call.1} parent=1 // pred_check
      _
    $region35: #{tpu_custom_call.1} parent=1 // pred_check_branch
      %66 = sbr.rel (0) target = $region37
    $region36: #{tpu_custom_call.1} parent=1 // pred_region
      _
    $region37: #{tpu_custom_call.1} parent=1 // pred_fallthru
      _
    // Predicated region
    $region38: #{tpu_custom_call.1} parent=1 // pred_check
      _
    $region39: #{tpu_custom_call.1} parent=1 // pred_check_branch
      %68 = sbr.rel (0) target = $region41
    $region40: #{tpu_custom_call.1} parent=1 // pred_region
      _
    $region41: #{tpu_custom_call.1} parent=1 // pred_fallthru
      _
    // Predicated region
    $region42: #{tpu_custom_call.1} parent=1 // pred_check
      _
    $region43: #{tpu_custom_call.1} parent=1 // pred_check_branch
      %70 = sbr.rel (0) target = $region45
    $region44: #{tpu_custom_call.1} parent=1 // pred_region
      _
    $region45: #{tpu_custom_call.1} parent=1 // pred_fallthru
      _
    // Predicated region
    $region46: #{tpu_custom_call.1} parent=1 // pred_check
      _
    $region47: #{tpu_custom_call.1} parent=1 // pred_check_branch
      %72 = sbr.rel (0) target = $region49
    $region48: #{tpu_custom_call.1} parent=1 // pred_region
      %73 = dma.done [#allocation4], 1024
    $region49: #{tpu_custom_call.1} parent=1 // pred_fallthru
      _
    // Predicated region
    $region50: #{tpu_custom_call.1} parent=1 // pred_check
      _
    $region51: #{tpu_custom_call.1} parent=1 // pred_check_branch
      %75 = sbr.rel (0) target = $region53
    $region52: #{tpu_custom_call.1} parent=1 // pred_region
      %76 = dma.done [#allocation7], 1024
    $region53: #{tpu_custom_call.1} parent=1 // pred_fallthru
      _
    // Predicated region
    $region54: #{tpu_custom_call.1} parent=1 // pred_check
      _
    $region55: #{tpu_custom_call.1} parent=1 // pred_check_branch
      %78 = sbr.rel (0) target = $region57
    $region56: #{tpu_custom_call.1} parent=1 // pred_region
      %79 = dma.done [#allocation7], 1024
    $region57: #{tpu_custom_call.1} parent=1 // pred_fallthru
      _
    %v80 = vld [vmem:[#allocation3] sm:$0xff]
    %v81 = vld [vmem:[#allocation3 + $0x8] sm:$0xff]
    %v82 = vld [vmem:[#allocation3 + $0x10] sm:$0xff]
    %v83 = vld [vmem:[#allocation3 + $0x18] sm:$0xff]
    %v84 = vld [vmem:[#allocation3 + $0x20] sm:$0xff]
    %v85 = vld [vmem:[#allocation3 + $0x28] sm:$0xff]
    %v86 = vld [vmem:[#allocation3 + $0x30] sm:$0xff]
    %v87 = vld [vmem:[#allocation3 + $0x38] sm:$0xff]
    %vm88 = vcmask 523264
    %v89 = vsel %vm88, %v80, 0.0
    %90 = vadd.xlane.f32.xlu0 %v89
    %v91 = vpop.xlane.xlu0 %90
    %v92 = vsel %vm88, %v81, 0.0
    %93 = vadd.xlane.f32.xlu0 %v92
    %v94 = vpop.xlane.xlu0 %93
    %v95 = vsel %vm88, %v82, 0.0
    %96 = vadd.xlane.f32.xlu0 %v95
    %v97 = vpop.xlane.xlu0 %96
    %v98 = vsel %vm88, %v83, 0.0
    %99 = vadd.xlane.f32.xlu0 %v98
    %v100 = vpop.xlane.xlu0 %99
    %v101 = vsel %vm88, %v84, 0.0
    %102 = vadd.xlane.f32.xlu0 %v101
    %v103 = vpop.xlane.xlu0 %102
    %v104 = vsel %vm88, %v85, 0.0
    %105 = vadd.xlane.f32.xlu0 %v104
    %v106 = vpop.xlane.xlu0 %105
    %v107 = vsel %vm88, %v86, 0.0
    %108 = vadd.xlane.f32.xlu0 %v107
    %v109 = vpop.xlane.xlu0 %108
    %v110 = vsel %vm88, %v87, 0.0
    %111 = vadd.xlane.f32.xlu0 %v110
    %v112 = vpop.xlane.xlu0 %111
    %v113 = vrcp.pop 64.0
    %v114 = vmul.f32 %v91, %v113
    %v115 = vmul.f32 %v94, %v113
    %v116 = vmul.f32 %v97, %v113
    %v117 = vmul.f32 %v100, %v113
    %v118 = vmul.f32 %v103, %v113
    %v119 = vmul.f32 %v106, %v113
    %v120 = vmul.f32 %v109, %v113
    %v121 = vmul.f32 %v112, %v113
    %v122 = vsub.f32 %v80, %v114
    %v123 = vsub.f32 %v81, %v115
    %v124 = vsub.f32 %v82, %v116
    %v125 = vsub.f32 %v83, %v117
    %v126 = vsub.f32 %v84, %v118
    %v127 = vsub.f32 %v85, %v119
    %v128 = vsub.f32 %v86, %v120
    %v129 = vsub.f32 %v87, %v121
    %v130 = vmul.f32 %v122, %v122
    %v131 = vmul.f32 %v123, %v123
    %v132 = vmul.f32 %v124, %v124
    %v133 = vmul.f32 %v125, %v125
    %v134 = vmul.f32 %v126, %v126
    %v135 = vmul.f32 %v127, %v127
    %v136 = vmul.f32 %v128, %v128
    %v137 = vmul.f32 %v129, %v129
    %v138 = vsel %vm88, %v130, 0.0
    %139 = vadd.xlane.f32.xlu0 %v138
    %v140 = vpop.xlane.xlu0 %139
    %v141 = vsel %vm88, %v131, 0.0
    %142 = vadd.xlane.f32.xlu0 %v141
    %v143 = vpop.xlane.xlu0 %142
    %v144 = vsel %vm88, %v132, 0.0
    %145 = vadd.xlane.f32.xlu0 %v144
    %v146 = vpop.xlane.xlu0 %145
    %v147 = vsel %vm88, %v133, 0.0
    %148 = vadd.xlane.f32.xlu0 %v147
    %v149 = vpop.xlane.xlu0 %148
    %v150 = vsel %vm88, %v134, 0.0
    %151 = vadd.xlane.f32.xlu0 %v150
    %v152 = vpop.xlane.xlu0 %151
    %v153 = vsel %vm88, %v135, 0.0
    %154 = vadd.xlane.f32.xlu0 %v153
    %v155 = vpop.xlane.xlu0 %154
    %v156 = vsel %vm88, %v136, 0.0
    %157 = vadd.xlane.f32.xlu0 %v156
    %v158 = vpop.xlane.xlu0 %157
    %v159 = vsel %vm88, %v137, 0.0
    %160 = vadd.xlane.f32.xlu0 %v159
    %v161 = vpop.xlane.xlu0 %160
    %v162 = vmul.f32 %v140, %v113
    %v163 = vmul.f32 %v143, %v113
    %v164 = vmul.f32 %v146, %v113
    %v165 = vmul.f32 %v149, %v113
    %v166 = vmul.f32 %v152, %v113
    %v167 = vmul.f32 %v155, %v113
    %v168 = vmul.f32 %v158, %v113
    %v169 = vmul.f32 %v161, %v113
    %v170 = vadd.f32 %v162, 1e-05
    %v171 = vadd.f32 %v163, 1e-05
    %v172 = vadd.f32 %v164, 1e-05
    %v173 = vadd.f32 %v165, 1e-05
    %v174 = vadd.f32 %v166, 1e-05
    %v175 = vadd.f32 %v167, 1e-05
    %v176 = vadd.f32 %v168, 1e-05
    %v177 = vadd.f32 %v169, 1e-05
    %v178 = vrsqrt.pop %v170
    %v179 = vrsqrt.pop %v171
    %v180 = vrsqrt.pop %v172
    %v181 = vrsqrt.pop %v173
    %v182 = vrsqrt.pop %v174
    %v183 = vrsqrt.pop %v175
    %v184 = vrsqrt.pop %v176
    %v185 = vrsqrt.pop %v177
    %v186 = vmul.f32 %v122, %v178
    %v187 = vmul.f32 %v123, %v179
    %v188 = vmul.f32 %v124, %v180
    %v189 = vmul.f32 %v125, %v181
    %v190 = vmul.f32 %v126, %v182
    %v191 = vmul.f32 %v127, %v183
    %v192 = vmul.f32 %v128, %v184
    %v193 = vmul.f32 %v129, %v185
    %v194 = vld [vmem:[%s1] sm:$0x1]
    %v196 = vlaneseq
    %v197 = vshrl.u32 %v196, 7
    %v198 = vsub.s32 0, %v197
    %v199 = vrot.slane %v194, %v198
    %v201 = vmul.f32 %v186, %v199
    %v202 = vmul.f32 %v187, %v199
    %v203 = vmul.f32 %v188, %v199
    %v204 = vmul.f32 %v189, %v199
    %v205 = vmul.f32 %v190, %v199
    %v206 = vmul.f32 %v191, %v199
    %v207 = vmul.f32 %v192, %v199
    %v208 = vmul.f32 %v193, %v199
    %v209 = vld [vmem:[%s2] sm:$0x1]
    %v211 = vlaneseq
    %v212 = vshrl.u32 %v211, 7
    %v213 = vsub.s32 0, %v212
    %v214 = vrot.slane %v209, %v213
    %v216 = vadd.f32 %v201, %v214
    %v217 = vadd.f32 %v202, %v214
    %v218 = vadd.f32 %v203, %v214
    %v219 = vadd.f32 %v204, %v214
    %v220 = vadd.f32 %v205, %v214
    %v221 = vadd.f32 %v206, %v214
    %v222 = vadd.f32 %v207, %v214
    %v223 = vadd.f32 %v208, %v214
    %v224 = vld [vmem:[#allocation6] sm:$0xff]
    %v225 = vld [vmem:[#allocation6 + $0x8] sm:$0xff]
    %v226 = vld [vmem:[#allocation6 + $0x10] sm:$0xff]
    %v227 = vld [vmem:[#allocation6 + $0x18] sm:$0xff]
    %v228 = vld [vmem:[#allocation6 + $0x20] sm:$0xff]
    %v229 = vld [vmem:[#allocation6 + $0x28] sm:$0xff]
    %v230 = vld [vmem:[#allocation6 + $0x30] sm:$0xff]
    %v231 = vld [vmem:[#allocation6 + $0x38] sm:$0xff]
    %v232 = vld [vmem:[%s4] sm:$0x1]
    %v234 = vlaneseq
    %v235 = vshrl.u32 %v234, 7
    %v236 = vsub.s32 0, %v235
    %v237 = vrot.slane %v232, %v236
    %v240 = vsel %vm88, %v216, 0
    %v243 = vsel %vm88, %v217, 0
    %v246 = vsel %vm88, %v218, 0
    %v249 = vsel %vm88, %v219, 0
    %v252 = vsel %vm88, %v220, 0
    %v255 = vsel %vm88, %v221, 0
    %v258 = vsel %vm88, %v222, 0
    %v261 = vsel %vm88, %v223, 0
    %263 = vmatprep.subr.mxu0 0.0
    %264 = vmatpush1.msra.mxu0 0.0
    %265 = vmatprep.subr.mxu0 0.0
    %266 = vmatpush1.msra.mxu0 0.0
    %267 = vmatprep.subr.mxu0 0.0
    %268 = vmatpush1.msra.mxu0 0.0
    %269 = vmatprep.subr.mxu0 0.0
    %270 = vmatpush1.msra.mxu0 0.0
    %271 = vmatprep.subr.mxu0 0.0
    %272 = vmatpush1.msra.mxu0 0.0
    %273 = vmatprep.subr.mxu0 0.0
    %274 = vmatpush1.msra.mxu0 0.0
    %275 = vmatprep.subr.mxu0 0.0
    %276 = vmatpush1.msra.mxu0 0.0
    %277 = vmatprep.subr.mxu0 0.0
    %278 = vmatpush1.msra.mxu0 0.0
    %279 = vmatprep.subr.mxu0 0.0
    %280 = vmatpush1.msra.mxu0 %v231
    %281 = vmatprep.subr.mxu0 0.0
    %282 = vmatpush1.msra.mxu0 %v230
    %283 = vmatprep.subr.mxu0 0.0
    %284 = vmatpush1.msra.mxu0 %v229
    %285 = vmatprep.subr.mxu0 0.0
    %286 = vmatpush1.msra.mxu0 %v228
    %287 = vmatprep.subr.mxu0 0.0
    %288 = vmatpush1.msra.mxu0 %v227
    %289 = vmatprep.subr.mxu0 0.0
    %290 = vmatpush1.msra.mxu0 %v226
    %291 = vmatprep.subr.mxu0 0.0
    %292 = vmatpush1.msra.mxu0 %v225
    %293 = vmatprep.subr.mxu0 0.0
    %294 = vmatpush1.msra.mxu0 %v224
    %295 = vmatprep.subr.mxu0 0.0
    %296 = vmatpush2.msra.mxu0 0.0
    %297 = vmatprep.subr.mxu0 0.0
    %298 = vmatpush2.msra.mxu0 0.0
    %299 = vmatprep.subr.mxu0 0.0
    %300 = vmatpush2.msra.mxu0 0.0
    %301 = vmatprep.subr.mxu0 0.0
    %302 = vmatpush2.msra.mxu0 0.0
    %303 = vmatprep.subr.mxu0 0.0
    %304 = vmatpush2.msra.mxu0 0.0
    %305 = vmatprep.subr.mxu0 0.0
    %306 = vmatpush2.msra.mxu0 0.0
    %307 = vmatprep.subr.mxu0 0.0
    %308 = vmatpush2.msra.mxu0 0.0
    %309 = vmatprep.subr.mxu0 0.0
    %310 = vmatpush2.msra.mxu0 0.0
    %311 = vmatprep.subr.mxu0 0.0
    %312 = vmatpush2.msra.mxu0 0.0
    %313 = vmatprep.subr.mxu0 0.0
    %314 = vmatpush2.msra.mxu0 0.0
    %315 = vmatprep.subr.mxu0 0.0
    %316 = vmatpush2.msra.mxu0 0.0
    %317 = vmatprep.subr.mxu0 0.0
    %318 = vmatpush2.msra.mxu0 0.0
    %319 = vmatprep.subr.mxu0 0.0
    %320 = vmatpush2.msra.mxu0 0.0
    %321 = vmatprep.subr.mxu0 0.0
    %322 = vmatpush2.msra.mxu0 0.0
    %323 = vmatprep.subr.mxu0 0.0
    %324 = vmatpush2.msra.mxu0 0.0
    %325 = vmatprep.subr.mxu0 0.0
    %326 = vmatpush2.msra.mxu0 0.0
    %327 = vmatprep.mubr.f32.mxu0 0.0
    %328 = vmatmul.mubr.f32.gmra.mxu0 %v240
    %v329 = vpop.f32.mrf.mxu0
    %v330 = vadd.f32 %v237, %v329
    %v331 = vpop.f32.mrf.mxu0
    %332 = vmatprep.mubr.f32.mxu0 0.0
    %333 = vmatmul.mubr.f32.gmra.mxu0 %v243
    %v334 = vpop.f32.mrf.mxu0
    %v335 = vadd.f32 %v237, %v334
    %v336 = vpop.f32.mrf.mxu0
    %337 = vmatprep.mubr.f32.mxu0 0.0
    %338 = vmatmul.mubr.f32.gmra.mxu0 %v246
    %v339 = vpop.f32.mrf.mxu0
    %v340 = vadd.f32 %v237, %v339
    %v341 = vpop.f32.mrf.mxu0
    %342 = vmatprep.mubr.f32.mxu0 0.0
    %343 = vmatmul.mubr.f32.gmra.mxu0 %v249
    %v344 = vpop.f32.mrf.mxu0
    %v345 = vadd.f32 %v237, %v344
    %v346 = vpop.f32.mrf.mxu0
    %347 = vmatprep.mubr.f32.mxu0 0.0
    %348 = vmatmul.mubr.f32.gmra.mxu0 %v252
    %v349 = vpop.f32.mrf.mxu0
    %v350 = vadd.f32 %v237, %v349
    %v351 = vpop.f32.mrf.mxu0
    %352 = vmatprep.mubr.f32.mxu0 0.0
    %353 = vmatmul.mubr.f32.gmra.mxu0 %v255
    %v354 = vpop.f32.mrf.mxu0
    %v355 = vadd.f32 %v237, %v354
    %v356 = vpop.f32.mrf.mxu0
    %357 = vmatprep.mubr.f32.mxu0 0.0
    %358 = vmatmul.mubr.f32.gmra.mxu0 %v258
    %v359 = vpop.f32.mrf.mxu0
    %v360 = vadd.f32 %v237, %v359
    %v361 = vpop.f32.mrf.mxu0
    %362 = vmatprep.mubr.f32.mxu0 0.0
    %363 = vmatmul.mubr.f32.gmra.mxu0 %v261
    %v364 = vpop.f32.mrf.mxu0
    %v365 = vadd.f32 %v237, %v364
    %v366 = vpop.f32.mrf.mxu0
    %367 = vdwg.mxu0
    %v368 = vmax.f32 %v330, 0.0
    %v369 = vmax.f32 %v335, 0.0
    %v370 = vmax.f32 %v340, 0.0
    %v371 = vmax.f32 %v345, 0.0
    %v372 = vmax.f32 %v350, 0.0
    %v373 = vmax.f32 %v355, 0.0
    %v374 = vmax.f32 %v360, 0.0
    %v375 = vmax.f32 %v365, 0.0
    %v376 = vld [vmem:[#allocation8] sm:$0xff]
    %v377 = vld [vmem:[#allocation8 + $0x8] sm:$0xff]
    %v378 = vld [vmem:[#allocation8 + $0x10] sm:$0xff]
    %v379 = vld [vmem:[#allocation8 + $0x18] sm:$0xff]
    %v380 = vld [vmem:[#allocation8 + $0x20] sm:$0xff]
    %v381 = vld [vmem:[#allocation8 + $0x28] sm:$0xff]
    %v382 = vld [vmem:[#allocation8 + $0x30] sm:$0xff]
    %v383 = vld [vmem:[#allocation8 + $0x38] sm:$0xff]
    %v385 = vsel %vm88, %v368, 0
    %v388 = vsel %vm88, %v369, 0
    %v391 = vsel %vm88, %v370, 0
    %v394 = vsel %vm88, %v371, 0
    %v397 = vsel %vm88, %v372, 0
    %v400 = vsel %vm88, %v373, 0
    %v403 = vsel %vm88, %v374, 0
    %v406 = vsel %vm88, %v375, 0
    %408 = vmatprep.subr.mxu0 0.0
    %409 = vmatpush1.msra.mxu0 0.0
    %410 = vmatprep.subr.mxu0 0.0
    %411 = vmatpush1.msra.mxu0 0.0
    %412 = vmatprep.subr.mxu0 0.0
    %413 = vmatpush1.msra.mxu0 0.0
    %414 = vmatprep.subr.mxu0 0.0
    %415 = vmatpush1.msra.mxu0 0.0
    %416 = vmatprep.subr.mxu0 0.0
    %417 = vmatpush1.msra.mxu0 0.0
    %418 = vmatprep.subr.mxu0 0.0
    %419 = vmatpush1.msra.mxu0 0.0
    %420 = vmatprep.subr.mxu0 0.0
    %421 = vmatpush1.msra.mxu0 0.0
    %422 = vmatprep.subr.mxu0 0.0
    %423 = vmatpush1.msra.mxu0 0.0
    %424 = vmatprep.subr.mxu0 0.0
    %425 = vmatpush1.msra.mxu0 %v383
    %426 = vmatprep.subr.mxu0 0.0
    %427 = vmatpush1.msra.mxu0 %v382
    %428 = vmatprep.subr.mxu0 0.0
    %429 = vmatpush1.msra.mxu0 %v381
    %430 = vmatprep.subr.mxu0 0.0
    %431 = vmatpush1.msra.mxu0 %v380
    %432 = vmatprep.subr.mxu0 0.0
    %433 = vmatpush1.msra.mxu0 %v379
    %434 = vmatprep.subr.mxu0 0.0
    %435 = vmatpush1.msra.mxu0 %v378
    %436 = vmatprep.subr.mxu0 0.0
    %437 = vmatpush1.msra.mxu0 %v377
    %438 = vmatprep.subr.mxu0 0.0
    %439 = vmatpush1.msra.mxu0 %v376
    %440 = vmatprep.subr.mxu0 0.0
    %441 = vmatpush2.msra.mxu0 0.0
    %442 = vmatprep.subr.mxu0 0.0
    %443 = vmatpush2.msra.mxu0 0.0
    %444 = vmatprep.subr.mxu0 0.0
    %445 = vmatpush2.msra.mxu0 0.0
    %446 = vmatprep.subr.mxu0 0.0
    %447 = vmatpush2.msra.mxu0 0.0
    %448 = vmatprep.subr.mxu0 0.0
    %449 = vmatpush2.msra.mxu0 0.0
    %450 = vmatprep.subr.mxu0 0.0
    %451 = vmatpush2.msra.mxu0 0.0
    %452 = vmatprep.subr.mxu0 0.0
    %453 = vmatpush2.msra.mxu0 0.0
    %454 = vmatprep.subr.mxu0 0.0
    %455 = vmatpush2.msra.mxu0 0.0
    %456 = vmatprep.subr.mxu0 0.0
    %457 = vmatpush2.msra.mxu0 0.0
    %458 = vmatprep.subr.mxu0 0.0
    %459 = vmatpush2.msra.mxu0 0.0
    %460 = vmatprep.subr.mxu0 0.0
    %461 = vmatpush2.msra.mxu0 0.0
    %462 = vmatprep.subr.mxu0 0.0
    %463 = vmatpush2.msra.mxu0 0.0
    %464 = vmatprep.subr.mxu0 0.0
    %465 = vmatpush2.msra.mxu0 0.0
    %466 = vmatprep.subr.mxu0 0.0
    %467 = vmatpush2.msra.mxu0 0.0
    %468 = vmatprep.subr.mxu0 0.0
    %469 = vmatpush2.msra.mxu0 0.0
    %470 = vmatprep.subr.mxu0 0.0
    %471 = vmatpush2.msra.mxu0 0.0
    %472 = vmatprep.mubr.f32.mxu0 0.0
    %473 = vmatmul.mubr.f32.gmra.mxu0 %v385
    %v474 = vpop.f32.mrf.mxu0
    %v475 = vadd.f32 0.0, %v474
    %v476 = vpop.f32.mrf.mxu0
    %477 = vmatprep.mubr.f32.mxu0 0.0
    %478 = vmatmul.mubr.f32.gmra.mxu0 %v388
    %v479 = vpop.f32.mrf.mxu0
    %v480 = vadd.f32 0.0, %v479
    %v481 = vpop.f32.mrf.mxu0
    %482 = vmatprep.mubr.f32.mxu0 0.0
    %483 = vmatmul.mubr.f32.gmra.mxu0 %v391
    %v484 = vpop.f32.mrf.mxu0
    %v485 = vadd.f32 0.0, %v484
    %v486 = vpop.f32.mrf.mxu0
    %487 = vmatprep.mubr.f32.mxu0 0.0
    %488 = vmatmul.mubr.f32.gmra.mxu0 %v394
    %v489 = vpop.f32.mrf.mxu0
    %v490 = vadd.f32 0.0, %v489
    %v491 = vpop.f32.mrf.mxu0
    %492 = vmatprep.mubr.f32.mxu0 0.0
    %493 = vmatmul.mubr.f32.gmra.mxu0 %v397
    %v494 = vpop.f32.mrf.mxu0
    %v495 = vadd.f32 0.0, %v494
    %v496 = vpop.f32.mrf.mxu0
    %497 = vmatprep.mubr.f32.mxu0 0.0
    %498 = vmatmul.mubr.f32.gmra.mxu0 %v400
    %v499 = vpop.f32.mrf.mxu0
    %v500 = vadd.f32 0.0, %v499
    %v501 = vpop.f32.mrf.mxu0
    %502 = vmatprep.mubr.f32.mxu0 0.0
    %503 = vmatmul.mubr.f32.gmra.mxu0 %v403
    %v504 = vpop.f32.mrf.mxu0
    %v505 = vadd.f32 0.0, %v504
    %v506 = vpop.f32.mrf.mxu0
    %507 = vmatprep.mubr.f32.mxu0 0.0
    %508 = vmatmul.mubr.f32.gmra.mxu0 %v406
    %v509 = vpop.f32.mrf.mxu0
    %v510 = vadd.f32 0.0, %v509
    %v511 = vpop.f32.mrf.mxu0
    %512 = vdwg.mxu0
    %v513 = vadd.f32 %v80, %v475
    %v514 = vadd.f32 %v81, %v480
    %v515 = vadd.f32 %v82, %v485
    %v516 = vadd.f32 %v83, %v490
    %v517 = vadd.f32 %v84, %v495
    %v518 = vadd.f32 %v85, %v500
    %v519 = vadd.f32 %v86, %v505
    %v520 = vadd.f32 %v87, %v510
    %v521 = vld [vmem:[%s6] sm:$0x1]
    %v523 = vlaneseq
    %v524 = vshrl.u32 %v523, 7
    %v525 = vsub.s32 0, %v524
    %v526 = vrot.slane %v521, %v525
    %v528 = vadd.f32 %v513, %v526
    %v529 = vadd.f32 %v514, %v526
    %v530 = vadd.f32 %v515, %v526
    %v531 = vadd.f32 %v516, %v526
    %v532 = vadd.f32 %v517, %v526
    %v533 = vadd.f32 %v518, %v526
    %v534 = vadd.f32 %v519, %v526
    %v535 = vadd.f32 %v520, %v526
    %536 = vst.msk [vmem:[#allocation2] sm:$0xff] %vm88, %v528
    %537 = vst.msk [vmem:[#allocation2 + $0x8] sm:$0xff] %vm88, %v529
    %538 = vst.msk [vmem:[#allocation2 + $0x10] sm:$0xff] %vm88, %v530
    %539 = vst.msk [vmem:[#allocation2 + $0x18] sm:$0xff] %vm88, %v531
    %544 = vrot.lane.b32.xlu0 %v532, 64
    %v545 = vpop.permute.xlu0 %544
    %546 = vrot.lane.b32.xlu0 %v533, 64
    %v547 = vpop.permute.xlu0 %546
    %548 = vrot.lane.b32.xlu0 %v534, 64
    %v549 = vpop.permute.xlu0 %548
    %550 = vrot.lane.b32.xlu0 %v535, 64
    %v551 = vpop.permute.xlu0 %550
    %vm556 = vcmask 1048064
    %557 = vst.msk [vmem:[#allocation2] sm:$0xff] %vm556, %v545
    %558 = vst.msk [vmem:[#allocation2 + $0x8] sm:$0xff] %vm556, %v547
    %559 = vst.msk [vmem:[#allocation2 + $0x10] sm:$0xff] %vm556, %v549
    %560 = vst.msk [vmem:[#allocation2 + $0x18] sm:$0xff] %vm556, %v551
    %v561 = vld [vmem:[%s7] sm:$0xff]
    %v562 = vld [vmem:[%s7 + $0x8] sm:$0xff]
    %v563 = vld [vmem:[#allocation2] sm:$0xff]
    %v564 = vld [vmem:[#allocation2 + $0x8] sm:$0xff]
    %v565 = vld [vmem:[#allocation2 + $0x10] sm:$0xff]
    %v566 = vld [vmem:[#allocation2 + $0x18] sm:$0xff]
    %v567 = vld [vmem:[%s8] sm:$0xff]
    %v568 = vld [vmem:[%s8 + $0x8] sm:$0xff]
    %570 = vset.pattern.permute.xlu0 0
    %571 = vperm.xlu0 %570, %v567
    %v572 = vpop.permute.xlu0 %571
    %575 = vset.pattern.permute.xlu0 0
    %576 = vperm.xlu0 %575, %v568
    %v577 = vpop.permute.xlu0 %576
    %vm579 = vcmask 261120
    %v581 = vsel %vm579, %v561, 0
    %v584 = vsel %vm579, %v562, 0
    %586 = vmatprep.subr.mxu0 0.0
    %587 = vmatpush1.msra.mxu0 0.0
    %588 = vmatprep.subr.mxu0 0.0
    %589 = vmatpush1.msra.mxu0 0.0
    %590 = vmatprep.subr.mxu0 0.0
    %591 = vmatpush1.msra.mxu0 0.0
    %592 = vmatprep.subr.mxu0 0.0
    %593 = vmatpush1.msra.mxu0 0.0
    %594 = vmatprep.subr.mxu0 0.0
    %595 = vmatpush1.msra.mxu0 0.0
    %596 = vmatprep.subr.mxu0 0.0
    %597 = vmatpush1.msra.mxu0 0.0
    %598 = vmatprep.subr.mxu0 0.0
    %599 = vmatpush1.msra.mxu0 0.0
    %600 = vmatprep.subr.mxu0 0.0
    %601 = vmatpush1.msra.mxu0 0.0
    %602 = vmatprep.subr.mxu0 0.0
    %603 = vmatpush1.msra.mxu0 0.0
    %604 = vmatprep.subr.mxu0 0.0
    %605 = vmatpush1.msra.mxu0 0.0
    %606 = vmatprep.subr.mxu0 0.0
    %607 = vmatpush1.msra.mxu0 0.0
    %608 = vmatprep.subr.mxu0 0.0
    %609 = vmatpush1.msra.mxu0 0.0
    %610 = vmatprep.subr.mxu0 0.0
    %611 = vmatpush1.msra.mxu0 %v566
    %612 = vmatprep.subr.mxu0 0.0
    %613 = vmatpush1.msra.mxu0 %v565
    %614 = vmatprep.subr.mxu0 0.0
    %615 = vmatpush1.msra.mxu0 %v564
    %616 = vmatprep.subr.mxu0 0.0
    %617 = vmatpush1.msra.mxu0 %v563
    %618 = vmatprep.subr.mxu0 0.0
    %619 = vmatpush2.msra.mxu0 0.0
    %620 = vmatprep.subr.mxu0 0.0
    %621 = vmatpush2.msra.mxu0 0.0
    %622 = vmatprep.subr.mxu0 0.0
    %623 = vmatpush2.msra.mxu0 0.0
    %624 = vmatprep.subr.mxu0 0.0
    %625 = vmatpush2.msra.mxu0 0.0
    %626 = vmatprep.subr.mxu0 0.0
    %627 = vmatpush2.msra.mxu0 0.0
    %628 = vmatprep.subr.mxu0 0.0
    %629 = vmatpush2.msra.mxu0 0.0
    %630 = vmatprep.subr.mxu0 0.0
    %631 = vmatpush2.msra.mxu0 0.0
    %632 = vmatprep.subr.mxu0 0.0
    %633 = vmatpush2.msra.mxu0 0.0
    %634 = vmatprep.subr.mxu0 0.0
    %635 = vmatpush2.msra.mxu0 0.0
    %636 = vmatprep.subr.mxu0 0.0
    %637 = vmatpush2.msra.mxu0 0.0
    %638 = vmatprep.subr.mxu0 0.0
    %639 = vmatpush2.msra.mxu0 0.0
    %640 = vmatprep.subr.mxu0 0.0
    %641 = vmatpush2.msra.mxu0 0.0
    %642 = vmatprep.subr.mxu0 0.0
    %643 = vmatpush2.msra.mxu0 0.0
    %644 = vmatprep.subr.mxu0 0.0
    %645 = vmatpush2.msra.mxu0 0.0
    %646 = vmatprep.subr.mxu0 0.0
    %647 = vmatpush2.msra.mxu0 0.0
    %648 = vmatprep.subr.mxu0 0.0
    %649 = vmatpush2.msra.mxu0 0.0
    %650 = vmatprep.mubr.f32.mxu0 0.0
    %651 = vmatmul.mubr.f32.gmra.mxu0 %v581
    %v652 = vpop.f32.mrf.mxu0
    %v653 = vadd.f32 %v572, %v652
    %v654 = vpop.f32.mrf.mxu0
    %655 = vmatprep.mubr.f32.mxu0 0.0
    %656 = vmatmul.mubr.f32.gmra.mxu0 %v584
    %v657 = vpop.f32.mrf.mxu0
    %v658 = vadd.f32 %v577, %v657
    %v659 = vpop.f32.mrf.mxu0
    %660 = vdwg.mxu0
    %v661 = vld [vmem:[%s9] sm:$0xf]
    %v662 = vld [vmem:[%s10] sm:$0xf]
    %664 = vset.pattern.permute.xlu0 0
    %665 = vperm.xlu0 %664, %v662
    %v666 = vpop.permute.xlu0 %665
    %v669 = vsel %vm88, %v661, 0
    %v672 = vsel %vm88, %v653, 0
    %v675 = vsel %vm88, %v658, 0
    %677 = vmatprep.subr.mxu0 0.0
    %678 = vmatpush1.xpose.msra.mxu0 0.0
    %679 = vmatprep.subr.mxu0 0.0
    %680 = vmatpush1.xpose.msra.mxu0 0.0
    %681 = vmatprep.subr.mxu0 0.0
    %682 = vmatpush1.xpose.msra.mxu0 0.0
    %683 = vmatprep.subr.mxu0 0.0
    %684 = vmatpush1.xpose.msra.mxu0 0.0
    %685 = vmatprep.subr.mxu0 0.0
    %686 = vmatpush1.xpose.msra.mxu0 0.0
    %687 = vmatprep.subr.mxu0 0.0
    %688 = vmatpush1.xpose.msra.mxu0 0.0
    %689 = vmatprep.subr.mxu0 0.0
    %690 = vmatpush1.xpose.msra.mxu0 0.0
    %691 = vmatprep.subr.mxu0 0.0
    %692 = vmatpush1.xpose.msra.mxu0 0.0
    %693 = vmatprep.subr.mxu0 0.0
    %694 = vmatpush1.xpose.msra.mxu0 0.0
    %695 = vmatprep.subr.mxu0 0.0
    %696 = vmatpush1.xpose.msra.mxu0 0.0
    %697 = vmatprep.subr.mxu0 0.0
    %698 = vmatpush1.xpose.msra.mxu0 0.0
    %699 = vmatprep.subr.mxu0 0.0
    %700 = vmatpush1.xpose.msra.mxu0 0.0
    %701 = vmatprep.subr.mxu0 0.0
    %702 = vmatpush1.xpose.msra.mxu0 0.0
    %703 = vmatprep.subr.mxu0 0.0
    %704 = vmatpush1.xpose.msra.mxu0 0.0
    %705 = vmatprep.subr.mxu0 0.0
    %706 = vmatpush1.xpose.msra.mxu0 %v675
    %707 = vmatprep.subr.mxu0 0.0
    %708 = vmatpush1.xpose.msra.mxu0 %v672
    %709 = vmatprep.subr.mxu0 0.0
    %710 = vmatpush2.xpose.msra.mxu0 0.0
    %711 = vmatprep.subr.mxu0 0.0
    %712 = vmatpush2.xpose.msra.mxu0 0.0
    %713 = vmatprep.subr.mxu0 0.0
    %714 = vmatpush2.xpose.msra.mxu0 0.0
    %715 = vmatprep.subr.mxu0 0.0
    %716 = vmatpush2.xpose.msra.mxu0 0.0
    %717 = vmatprep.subr.mxu0 0.0
    %718 = vmatpush2.xpose.msra.mxu0 0.0
    %719 = vmatprep.subr.mxu0 0.0
    %720 = vmatpush2.xpose.msra.mxu0 0.0
    %721 = vmatprep.subr.mxu0 0.0
    %722 = vmatpush2.xpose.msra.mxu0 0.0
    %723 = vmatprep.subr.mxu0 0.0
    %724 = vmatpush2.xpose.msra.mxu0 0.0
    %725 = vmatprep.subr.mxu0 0.0
    %726 = vmatpush2.xpose.msra.mxu0 0.0
    %727 = vmatprep.subr.mxu0 0.0
    %728 = vmatpush2.xpose.msra.mxu0 0.0
    %729 = vmatprep.subr.mxu0 0.0
    %730 = vmatpush2.xpose.msra.mxu0 0.0
    %731 = vmatprep.subr.mxu0 0.0
    %732 = vmatpush2.xpose.msra.mxu0 0.0
    %733 = vmatprep.subr.mxu0 0.0
    %734 = vmatpush2.xpose.msra.mxu0 0.0
    %735 = vmatprep.subr.mxu0 0.0
    %736 = vmatpush2.xpose.msra.mxu0 0.0
    %737 = vmatprep.subr.mxu0 0.0
    %738 = vmatpush2.xpose.msra.mxu0 0.0
    %739 = vmatprep.subr.mxu0 0.0
    %740 = vmatpush2.xpose.msra.mxu0 0.0
    %741 = vmatprep.mubr.f32.mxu0 0.0
    %742 = vmatmul.mubr.f32.gmra.mxu0 %v669
    %v743 = vpop.f32.mrf.mxu0
    %v744 = vadd.f32 %v666, %v743
    %v745 = vpop.f32.mrf.mxu0
    %746 = vdwg.mxu0
    %v747 = vmul.f32 %v744, %v744
    %vm748 = vcmask 125952
    %v749 = vsel %vm748, %v747, 0.0
    %750 = vadd.xlane.f32.xlu0 %v749
    %v751 = vpop.xlane.xlu0 %750
    %vm752 = vcmask 1043456
    %v753 = vsel %vm752, %v751, 0.0
    %v754 = vrot.slane %v753, 4
    %v755 = vadd.f32 %v753, %v754
    %v756 = vrot.slane %v755, 2
    %v757 = vadd.f32 %v755, %v756
    %v758 = vrot.slane %v757, 1
    %v759 = vadd.f32 %v757, %v758
    %v760 = vmax.f32 %v759, 1e-24
    %v761 = vrsqrt.pop %v760
    %v762 = vmul.f32 %v744, %v761
    %763 = vst.msk [vmem:[#allocation9] sm:$0xf] %vm748, %v762
    %764 = vrot.lane.b32.xlu0 %v653, 64
    %v765 = vpop.permute.xlu0 %764
    %766 = vrot.lane.b32.xlu0 %v658, 64
    %v767 = vpop.permute.xlu0 %766
    %v768 = vsel %vm88, %v765, 0
    %v770 = vsel %vm88, %v767, 0
    %772 = vmatprep.subr.mxu0 0.0
    %773 = vmatpush1.xpose.msra.mxu0 0.0
    %774 = vmatprep.subr.mxu0 0.0
    %775 = vmatpush1.xpose.msra.mxu0 0.0
    %776 = vmatprep.subr.mxu0 0.0
    %777 = vmatpush1.xpose.msra.mxu0 0.0
    %778 = vmatprep.subr.mxu0 0.0
    %779 = vmatpush1.xpose.msra.mxu0 0.0
    %780 = vmatprep.subr.mxu0 0.0
    %781 = vmatpush1.xpose.msra.mxu0 0.0
    %782 = vmatprep.subr.mxu0 0.0
    %783 = vmatpush1.xpose.msra.mxu0 0.0
    %784 = vmatprep.subr.mxu0 0.0
    %785 = vmatpush1.xpose.msra.mxu0 0.0
    %786 = vmatprep.subr.mxu0 0.0
    %787 = vmatpush1.xpose.msra.mxu0 0.0
    %788 = vmatprep.subr.mxu0 0.0
    %789 = vmatpush1.xpose.msra.mxu0 0.0
    %790 = vmatprep.subr.mxu0 0.0
    %791 = vmatpush1.xpose.msra.mxu0 0.0
    %792 = vmatprep.subr.mxu0 0.0
    %793 = vmatpush1.xpose.msra.mxu0 0.0
    %794 = vmatprep.subr.mxu0 0.0
    %795 = vmatpush1.xpose.msra.mxu0 0.0
    %796 = vmatprep.subr.mxu0 0.0
    %797 = vmatpush1.xpose.msra.mxu0 0.0
    %798 = vmatprep.subr.mxu0 0.0
    %799 = vmatpush1.xpose.msra.mxu0 0.0
    %800 = vmatprep.subr.mxu0 0.0
    %801 = vmatpush1.xpose.msra.mxu0 %v770
    %802 = vmatprep.subr.mxu0 0.0
    %803 = vmatpush1.xpose.msra.mxu0 %v768
    %804 = vmatprep.subr.mxu0 0.0
    %805 = vmatpush2.xpose.msra.mxu0 0.0
    %806 = vmatprep.subr.mxu0 0.0
    %807 = vmatpush2.xpose.msra.mxu0 0.0
    %808 = vmatprep.subr.mxu0 0.0
    %809 = vmatpush2.xpose.msra.mxu0 0.0
    %810 = vmatprep.subr.mxu0 0.0
    %811 = vmatpush2.xpose.msra.mxu0 0.0
    %812 = vmatprep.subr.mxu0 0.0
    %813 = vmatpush2.xpose.msra.mxu0 0.0
    %814 = vmatprep.subr.mxu0 0.0
    %815 = vmatpush2.xpose.msra.mxu0 0.0
    %816 = vmatprep.subr.mxu0 0.0
    %817 = vmatpush2.xpose.msra.mxu0 0.0
    %818 = vmatprep.subr.mxu0 0.0
    %819 = vmatpush2.xpose.msra.mxu0 0.0
    %820 = vmatprep.subr.mxu0 0.0
    %821 = vmatpush2.xpose.msra.mxu0 0.0
    %822 = vmatprep.subr.mxu0 0.0
    %823 = vmatpush2.xpose.msra.mxu0 0.0
    %824 = vmatprep.subr.mxu0 0.0
    %825 = vmatpush2.xpose.msra.mxu0 0.0
    %826 = vmatprep.subr.mxu0 0.0
    %827 = vmatpush2.xpose.msra.mxu0 0.0
    %828 = vmatprep.subr.mxu0 0.0
    %829 = vmatpush2.xpose.msra.mxu0 0.0
    %830 = vmatprep.subr.mxu0 0.0
    %831 = vmatpush2.xpose.msra.mxu0 0.0
    %832 = vmatprep.subr.mxu0 0.0
    %833 = vmatpush2.xpose.msra.mxu0 0.0
    %834 = vmatprep.subr.mxu0 0.0
    %835 = vmatpush2.xpose.msra.mxu0 0.0
    %836 = vmatprep.mubr.f32.mxu0 0.0
    %837 = vmatmul.mubr.f32.gmra.mxu0 %v669
    %v838 = vpop.f32.mrf.mxu0
    %v839 = vadd.f32 %v666, %v838
    %v840 = vpop.f32.mrf.mxu0
    %841 = vdwg.mxu0
    %v842 = vmul.f32 %v839, %v839
    %v843 = vsel %vm748, %v842, 0.0
    %844 = vadd.xlane.f32.xlu0 %v843
    %v845 = vpop.xlane.xlu0 %844
    %v846 = vsel %vm752, %v845, 0.0
    %v847 = vrot.slane %v846, 4
    %v848 = vadd.f32 %v846, %v847
    %v849 = vrot.slane %v848, 2
    %v850 = vadd.f32 %v848, %v849
    %v851 = vrot.slane %v850, 1
    %v852 = vadd.f32 %v850, %v851
    %v853 = vmax.f32 %v852, 1e-24
    %v854 = vrsqrt.pop %v853
    %v855 = vmul.f32 %v839, %v854
    %s856 = scalar_lea.vmem [#allocation9], 4
    %857 = vst.msk [vmem:[%s856] sm:$0xf] %vm748, %v855
    // Predicated region
    $region58: #{tpu_custom_call.1} parent=1 // pred_check
      _
    $region59: #{tpu_custom_call.1} parent=1 // pred_check_branch
      %859 = sbr.rel (0) target = $region61
    $region60: #{tpu_custom_call.1} parent=1 // pred_region
      %s861 = ssub.s32 128, 128
      %862 = vsyncadd [#allocation5], %s861
      %s863 = sshll.u32 [#allocation9], 4
      %s864 = int_to_ptr.vmem [resolvable:$true] %s863
      %869 = dma.vmem_to_hbm [thread:$0]  %s864, 128, %s11, [#allocation5], 64, 64, 4
    $region61: #{tpu_custom_call.1} parent=1 // pred_fallthru
      _
    // Predicated region
    $region62: #{tpu_custom_call.1} parent=1 // pred_check
      _
    $region63: #{tpu_custom_call.1} parent=1 // pred_check_branch
      %871 = sbr.rel (0) target = $region65
    $region64: #{tpu_custom_call.1} parent=1 // pred_region
      %872 = dma.done [#allocation5], 128
    $region65: #{tpu_custom_call.1} parent=1 // pred_fallthru
      _
    %873 = vsyncpa [#allocation4], 1
    %874 = vsyncpa [#allocation7], 1
    %875 = vsyncpa [#allocation5], 1

</llo_original>
